<compile_context>
chip_gen: v7x
topology: tpu7x:2x2x1
jax: 0.10.0
libtpu: 0.0.40
codegen_flags: <defaults>
</compile_context>

<pallas_src>
import jax
import jax.numpy as jnp
from jax import lax
from jax.experimental import pallas as pl
from jax.experimental.pallas import tpu as pltpu

SCALE = 128.0          # DotReluBlock default scale
INV_SCALE = 1.0 / SCALE


# --------------------------------------------------------------------------- #
# Kernel                                                                       #
# --------------------------------------------------------------------------- #
def _discrete_action_kernel(stim_ref, lens_ref, a_ref,
                            wk1_ref, bk1_ref, wk2t_ref, bk2t_ref,
                            wv1bd_ref, bv1c_ref, wv2bd_ref, bv2c_ref,
                            out_ref, kb_ref):
    TB, TN = out_ref.shape          # batch tile, action tile
    TBH = a_ref.shape[0]            # TB * H  (merged batch*feature rows)
    H = TBH // TB

    # --- key branch: once per batch tile (first action-tile step).  Produces
    # the (TB, TB*H) block-row score matrix kb; DotReluBlock's 1/scale is
    # already folded into the pre-tiled layer-2 weights/bias.
    @pl.when(pl.program_id(1) == 0)
    def _():
        k1 = jnp.dot(stim_ref[...], wk1_ref[...],
                     preferred_element_type=jnp.float32) + bk1_ref[...]
        k1 = jnp.maximum(k1, 0.0).astype(wk2t_ref.dtype)
        k2 = jnp.dot(k1, wk2t_ref[...],
                     preferred_element_type=jnp.float32) + bk2t_ref[...]
        k2 = jnp.maximum(k2, 0.0)                               # (TB, TB*H)
        # keep only each row's own H-wide block -> block-row matrix
        col = lax.broadcasted_iota(jnp.int32, (TB, TBH), 1)
        row_start = lax.broadcasted_iota(jnp.int32, (TB, TBH), 0) * H
        keep = (col >= row_start) & (col < row_start + H)
        kb_ref[...] = jnp.where(keep, k2, 0.0)

    # --- val branch: whole batch tile as two full-width MXU matmuls -----------
    a = a_ref[...]                                              # (TB*H, TN) bf16
    v = jnp.dot(wv1bd_ref[...], a,
                preferred_element_type=jnp.float32) + bv1c_ref[...]
    v = jnp.maximum(v, 0.0).astype(jnp.bfloat16)                # f32 ReLU, cast at matmul
    v = jnp.dot(wv2bd_ref[...], v,
                preferred_element_type=jnp.float32) + bv2c_ref[...]
    v = jnp.maximum(v, 0.0)                                     # (TB*H, TN) f32

    # --- score + length mask: one batched matmul, one batched store -----------
    s = jnp.dot(kb_ref[...], v, preferred_element_type=jnp.float32)   # (TB, TN)
    col_ids = pl.program_id(1) * TN + lax.broadcasted_iota(jnp.int32, (TB, TN), 1)
    out_ref[...] = jnp.where(col_ids >= lens_ref[...], 0.0, s)


# --------------------------------------------------------------------------- #
# Tile / VMEM helpers                                                          #
# --------------------------------------------------------------------------- #
def _pick_batch_tile(b, target, align=8):
    """Largest aligned divisor of b that is <= target, preferring a choice that
    leaves >= 2 batch tiles so both v7x TensorCores get work."""
    best = None
    t = max(align, min(target, b) - min(target, b) % align)
    while t >= align:
        if b % t == 0:
            if best is None:
                best = t
            if b // t >= 2:
                return t
        t -= align
    return best if best is not None else b


def _pick_lane_tile(n, target, align=128):
    """Largest lane-aligned divisor of n that is <= target (n is pre-padded to a
    multiple of 128, so at least `align` always works)."""
    t = max(align, min(target, n) - min(target, n) % align)
    while t >= align:
        if n % t == 0:
            return t
        t -= align
    return n


def _physical_vmem_bytes():
    """Best-effort physical VMEM size; 128 MiB fallback if the query fails."""
    try:
        info = pltpu.get_tpu_info()
        for name in ("vmem_capacity_bytes", "vmem_bytes", "vmem_size_bytes"):
            v = getattr(info, name, None)
            if v:
                return int(v)
    except Exception:
        pass
    return 128 << 20


# --------------------------------------------------------------------------- #
# Wrapper                                                                      #
# --------------------------------------------------------------------------- #
def init_params(key, h):
    """Deterministic synthetic parameters for the two ReluBlock(h) MLPs.
    Weights are stored in (in, out) layout (pre-transposed vs torch.nn.Linear)."""
    ks = jax.random.split(key, 8)
    s = 1.0 / jnp.sqrt(h)
    names = ["wk1", "bk1", "wk2", "bk2", "wv1", "bv1", "wv2", "bv2"]
    shapes = [(h, h), (1, h)] * 4
    return {n: jax.random.uniform(k, sh, jnp.float32, -s, s)
            for n, k, sh in zip(names, ks, shapes)}


def discrete_action(stim, args, lens, params, *, tb_target=8, tn_target=2048):
    """stim (B,H) f32, args (B,N,H) f32, lens (B,1) int -> scores (B,N) f32."""
    B, N, H = args.shape
    assert stim.shape == (B, H)

    # Pad so tiles are always well-shaped (never whole-array fallback blocks).
    B_pad = ((B + 7) // 8) * 8
    N_pad = ((N + 127) // 128) * 128
    TB = _pick_batch_tile(B_pad, tb_target)
    TN = _pick_lane_tile(N_pad, tn_target)
    TBH = TB * H
    grid = (B_pad // TB, N_pad // TN)

    # ---- operand preparation (layout + dtype), cheap one-pass XLA ops --------
    # args: (B, N, H) -> feature-on-sublane (B*H, N) bf16 slab.
    # TODO(synk): produce args in (B, H, N) layout upstream to skip this transpose.
    args_t = jnp.transpose(args, (0, 2, 1)).astype(jnp.bfloat16)        # (B, H, N)
    if N_pad != N:
        args_t = jnp.pad(args_t, ((0, 0), (0, 0), (0, N_pad - N)))
    if B_pad != B:
        args_t = jnp.pad(args_t, ((0, B_pad - B), (0, 0), (0, 0)))
    args_m = args_t.reshape(B_pad * H, N_pad)

    stim_b = stim.astype(jnp.bfloat16)
    lens_i = lens.astype(jnp.int32).reshape(B, 1)
    if B_pad != B:
        stim_b = jnp.pad(stim_b, ((0, B_pad - B), (0, 0)))
        lens_i = jnp.pad(lens_i, ((0, B_pad - B), (0, 0)))   # len 0 -> all masked

    # key branch: (in, out) weights; 1/scale folded into layer 2 (exact, power
    # of two); layer 2 pre-tiled to (H, TB*H) so the key output already lives in
    # the block-row score-matrix domain.
    wk1 = params["wk1"].astype(jnp.bfloat16)
    bk1 = params["bk1"].astype(jnp.float32)
    wk2t = (jnp.tile(params["wk2"], (1, TB)) * INV_SCALE).astype(jnp.bfloat16)
    bk2t = (jnp.tile(params["bk2"], (1, TB)) * INV_SCALE).astype(jnp.float32)

    # val branch: block-diagonal (TB*H, TB*H) weights, column orientation
    # (y = W_col @ x with W_col = W.T), so one MXU pass covers the whole batch tile.
    eye = jnp.eye(TB, dtype=jnp.float32)
    wv1bd = jnp.kron(eye, params["wv1"].T).astype(jnp.bfloat16)         # (TBH, TBH)
    wv2bd = jnp.kron(eye, params["wv2"].T).astype(jnp.bfloat16)
    bv1c = jnp.tile(params["bv1"].reshape(H, 1), (TB, 1)).astype(jnp.float32)  # (TBH, 1)
    bv2c = jnp.tile(params["bv2"].reshape(H, 1), (TB, 1)).astype(jnp.float32)

    def _resident(a):
        return pl.BlockSpec(a.shape, lambda i, j: (0, 0))

    in_specs = [
        pl.BlockSpec((TB, H), lambda i, j: (i, 0)),        # stim
        pl.BlockSpec((TB, 1), lambda i, j: (i, 0)),        # lens
        pl.BlockSpec((TBH, TN), lambda i, j: (i, j)),      # args (B*H, N) slab
        _resident(wk1), _resident(bk1),
        _resident(wk2t), _resident(bk2t),
        _resident(wv1bd), _resident(bv1c),
        _resident(wv2bd), _resident(bv2c),
    ]
    out_spec = pl.BlockSpec((TB, TN), lambda i, j: (i, j))

    # Advisory cost so XLA schedules neighbors around the custom call sensibly.
    flops = 4 * B * H * H + 4 * B * N * H * H + 2 * B * N * H
    bytes_accessed = (args_m.size * 2 + stim_b.size * 2 + lens_i.size * 4
                      + (2 * TBH * TBH + H * TBH + H * H) * 2
                      + (2 * TBH + 2 * H) * 4 + B_pad * N_pad * 4)
    cost = pl.CostEstimate(flops=flops, transcendentals=0,
                           bytes_accessed=bytes_accessed)

    # ---- generation-aware VMEM budget ---------------------------------------
    tile_bytes = 2 * (TBH * TN * 2        # args block (bf16), double buffered
                      + TB * TN * 4       # out block
                      + TB * H * 2        # stim block
                      + TB * 128 * 4)     # lens block (lane padded)
    resident_bytes = (H * H * 2 + H * TBH * 2          # key weights (bf16)
                      + 2 * TBH * TBH * 2              # block-diag val weights
                      + 2 * TBH * 128 * 4              # val biases (lane padded)
                      + 2 * 8 * 128 * 4                # key biases (lane padded)
                      + TB * TBH * 4)                  # kb scratch
    interm_bytes = 4 * TBH * TN * 4       # val-MLP f32 intermediates / spills
    need = 2 * tile_bytes + resident_bytes + interm_bytes + (4 << 20)
    phys = _physical_vmem_bytes()
    cap = max(32 << 20, min(int(phys * 0.55), 96 << 20))  # ~35 MiB v7x, ~70 MiB v5e/v6e
    vmem_limit = int(min(max(need, 32 << 20), cap))

    out = pl.pallas_call(
        _discrete_action_kernel,
        out_shape=jax.ShapeDtypeStruct((B_pad, N_pad), jnp.float32),
        grid=grid,
        in_specs=in_specs,
        out_specs=out_spec,
        scratch_shapes=[pltpu.VMEM((TB, TBH), jnp.float32)],   # block-row key matrix
        compiler_params=pltpu.CompilerParams(
            dimension_semantics=("parallel", "arbitrary"),
            vmem_limit_bytes=vmem_limit),
        cost_estimate=cost,
    )(stim_b, lens_i, args_m,
      wk1, bk1, wk2t, bk2t, wv1bd, bv1c, wv2bd, bv2c)

    if B_pad != B or N_pad != N:
        out = out[:B, :N]
    return out


# --------------------------------------------------------------------------- #
# Pure-JAX reference & demo                                                    #
# --------------------------------------------------------------------------- #
def _reference(stim, args, lens, p):
    """Pure-JAX f32 reference mirroring the PyTorch forward."""
    k = jnp.maximum(stim @ p["wk1"] + p["bk1"], 0.0)
    k = jnp.maximum(k @ p["wk2"] + p["bk2"], 0.0)
    v = jnp.maximum(args @ p["wv1"] + p["bv1"], 0.0)
    v = jnp.maximum(v @ p["wv2"] + p["bv2"], 0.0)
    x = jnp.sum(k[:, None, :] * v, axis=-1) / SCALE
    idx = jnp.arange(x.shape[-1])[None, :]
    return jnp.where(idx >= lens, 0.0, x)


if __name__ == "__main__":
    B, N, H = 16, 256, 32       # batch, max #candidate actions, hidden size
    key = jax.random.PRNGKey(0)
    k_stim, k_args, k_lens, k_params = jax.random.split(key, 4)

    stim = jax.random.normal(k_stim, (B, H), jnp.float32)
    args = jax.random.normal(k_args, (B, N, H), jnp.float32)
    lens = jax.random.randint(k_lens, (B, 1), 1, N)    # every row has a masked tail
    params = init_params(k_params, H)

    # tn_target=128 -> (2, 2) grid at this size: exercises both grid axes, the
    # once-per-batch-tile key gate, and the >=2-batch-tile megacore split.
    out = discrete_action(stim, args, lens, params, tn_target=128)
    out = jax.block_until_ready(out)

    ref = _reference(stim, args, lens, params)
    assert out.shape == (B, N)
    # bf16 matmul inputs with f32 accumulation -> relaxed tolerance vs f32 ref.
    assert jnp.allclose(out, ref, atol=1e-2, rtol=2e-2), (
        float(jnp.max(jnp.abs(out - ref))))
    # masked positions must be exactly zero for every row
    col = jnp.arange(N)[None, :]
    assert bool(jnp.all(jnp.where(col >= lens, out == 0.0, True)))
    assert bool(jnp.all(out[0, int(lens[0, 0]):] == 0.0))
    print("KERNEL_OK")
</pallas_src>

<mosaic_0001>
module attributes {stable_mosaic.version = 11 : i64} {
  func.func @_discrete_action_kernel(%arg0: i32, %arg1: i32, %arg2: memref<8x32xbf16, #tpu.memory_space<vmem>>, %arg3: memref<8x1xi32, #tpu.memory_space<vmem>>, %arg4: memref<256x128xbf16, #tpu.memory_space<vmem>>, %arg5: memref<32x32xbf16, #tpu.memory_space<vmem>>, %arg6: memref<1x32xf32, #tpu.memory_space<vmem>>, %arg7: memref<32x256xbf16, #tpu.memory_space<vmem>>, %arg8: memref<1x256xf32, #tpu.memory_space<vmem>>, %arg9: memref<256x256xbf16, #tpu.memory_space<vmem>>, %arg10: memref<256x1xf32, #tpu.memory_space<vmem>>, %arg11: memref<256x256xbf16, #tpu.memory_space<vmem>>, %arg12: memref<256x1xf32, #tpu.memory_space<vmem>>, %arg13: memref<8x128xf32, #tpu.memory_space<vmem>>, %arg14: memref<8x256xf32, #tpu.memory_space<vmem>>) attributes {dimension_semantics = [#tpu.dimension_semantics<parallel>, #tpu.dimension_semantics<arbitrary>], iteration_bounds = array<i64: 2, 2>, scalar_prefetch = 0 : i64, scratch_operands = 1 : i64, tpu.core_type = #tpu.core_type<tc>, window_params = [{transform_indices = @transform_0, window_bounds = array<i64: 8, 32>}, {transform_indices = @transform_1, window_bounds = array<i64: 8, 1>}, {transform_indices = @transform_2, window_bounds = array<i64: 256, 128>}, {pipeline_mode = #tpu.pipeline_mode<synchronous>, transform_indices = @transform_3, window_bounds = array<i64: 32, 32>}, {pipeline_mode = #tpu.pipeline_mode<synchronous>, transform_indices = @transform_4, window_bounds = array<i64: 1, 32>}, {pipeline_mode = #tpu.pipeline_mode<synchronous>, transform_indices = @transform_5, window_bounds = array<i64: 32, 256>}, {pipeline_mode = #tpu.pipeline_mode<synchronous>, transform_indices = @transform_6, window_bounds = array<i64: 1, 256>}, {pipeline_mode = #tpu.pipeline_mode<synchronous>, transform_indices = @transform_7, window_bounds = array<i64: 256, 256>}, {pipeline_mode = #tpu.pipeline_mode<synchronous>, transform_indices = @transform_8, window_bounds = array<i64: 256, 1>}, {pipeline_mode = #tpu.pipeline_mode<synchronous>, transform_indices = @transform_9, window_bounds = array<i64: 256, 256>}, {pipeline_mode = #tpu.pipeline_mode<synchronous>, transform_indices = @transform_10, window_bounds = array<i64: 256, 1>}, {transform_indices = @transform_11, window_bounds = array<i64: 8, 128>}]} {
    %c0_i32 = arith.constant 0 : i32
    %0 = arith.cmpi eq, %arg1, %c0_i32 : i32
    %1 = arith.extui %0 : i1 to i32
    %c0_i32_0 = arith.constant 0 : i32
    %2 = arith.cmpi ne, %1, %c0_i32_0 : i32
    scf.if %2 {
      %c0_21 = arith.constant 0 : index
      %c0_22 = arith.constant 0 : index
      %31 = vector.load %arg2[%c0_21, %c0_22] : memref<8x32xbf16, #tpu.memory_space<vmem>>, vector<8x32xbf16>
      %c0_23 = arith.constant 0 : index
      %c0_24 = arith.constant 0 : index
      %32 = vector.load %arg5[%c0_23, %c0_24] : memref<32x32xbf16, #tpu.memory_space<vmem>>, vector<32x32xbf16>
      %cst_25 = arith.constant dense<0.000000e+00> : vector<8x32xf32>
      %33 = tpu.matmul %31, %32, %cst_25 {dimension_numbers = #tpu.dot_dimension_numbers<[1], [0], [0], [1], [0, 0, 1, 1], [], []>} : vector<8x32xbf16>, vector<32x32xbf16>, vector<8x32xf32> -> vector<8x32xf32>
      %c0_26 = arith.constant 0 : index
      %c0_27 = arith.constant 0 : index
      %34 = vector.load %arg6[%c0_26, %c0_27] : memref<1x32xf32, #tpu.memory_space<vmem>>, vector<1x32xf32>
      %35 = vector.broadcast %34 : vector<1x32xf32> to vector<8x32xf32>
      %36 = arith.addf %33, %35 : vector<8x32xf32>
      %cst_28 = arith.constant 0.000000e+00 : f32
      %37 = vector.broadcast %cst_28 : f32 to vector<8x32xf32>
      %38 = arith.maximumf %36, %37 : vector<8x32xf32>
      %39 = arith.truncf %38 : vector<8x32xf32> to vector<8x32xbf16>
      %c0_29 = arith.constant 0 : index
      %c0_30 = arith.constant 0 : index
      %40 = vector.load %arg7[%c0_29, %c0_30] : memref<32x256xbf16, #tpu.memory_space<vmem>>, vector<32x256xbf16>
      %cst_31 = arith.constant dense<0.000000e+00> : vector<8x256xf32>
      %41 = tpu.matmul %39, %40, %cst_31 {dimension_numbers = #tpu.dot_dimension_numbers<[1], [0], [0], [1], [0, 0, 1, 1], [], []>} : vector<8x32xbf16>, vector<32x256xbf16>, vector<8x256xf32> -> vector<8x256xf32>
      %c0_32 = arith.constant 0 : index
      %c0_33 = arith.constant 0 : index
      %42 = vector.load %arg8[%c0_32, %c0_33] : memref<1x256xf32, #tpu.memory_space<vmem>>, vector<1x256xf32>
      %43 = vector.broadcast %42 : vector<1x256xf32> to vector<8x256xf32>
      %44 = arith.addf %41, %43 : vector<8x256xf32>
      %cst_34 = arith.constant 0.000000e+00 : f32
      %45 = vector.broadcast %cst_34 : f32 to vector<8x256xf32>
      %46 = arith.maximumf %44, %45 : vector<8x256xf32>
      %47 = tpu.iota {dimensions = array<i32: 1>} : vector<8x256xi32>
      %48 = tpu.iota {dimensions = array<i32: 0>} : vector<8x256xi32>
      %c32_i32 = arith.constant 32 : i32
      %49 = vector.broadcast %c32_i32 : i32 to vector<8x256xi32>
      %50 = arith.muli %48, %49 : vector<8x256xi32>
      %51 = arith.cmpi sge, %47, %50 : vector<8x256xi32>
      %c32_i32_35 = arith.constant 32 : i32
      %52 = vector.broadcast %c32_i32_35 : i32 to vector<8x256xi32>
      %53 = arith.addi %50, %52 : vector<8x256xi32>
      %54 = arith.cmpi slt, %47, %53 : vector<8x256xi32>
      %55 = arith.andi %51, %54 : vector<8x256xi1>
      %cst_36 = arith.constant 0.000000e+00 : f32
      %56 = vector.broadcast %cst_36 : f32 to vector<8x256xf32>
      %57 = arith.select %55, %46, %56 : vector<8x256xi1>, vector<8x256xf32>
      %c0_37 = arith.constant 0 : index
      %c0_38 = arith.constant 0 : index
      %58 = vector.load %arg14[%c0_37, %c0_38] : memref<8x256xf32, #tpu.memory_space<vmem>>, vector<8x256xf32>
      tpu.vector_store %arg14[%c0_37, %c0_38], %57 {strides = array<i32>} : memref<8x256xf32, #tpu.memory_space<vmem>>, vector<8x256xf32>,
    } else {
    }
    %c0 = arith.constant 0 : index
    %c0_1 = arith.constant 0 : index
    %3 = vector.load %arg4[%c0, %c0_1] : memref<256x128xbf16, #tpu.memory_space<vmem>>, vector<256x128xbf16>
    %c0_2 = arith.constant 0 : index
    %c0_3 = arith.constant 0 : index
    %4 = vector.load %arg9[%c0_2, %c0_3] : memref<256x256xbf16, #tpu.memory_space<vmem>>, vector<256x256xbf16>
    %cst = arith.constant dense<0.000000e+00> : vector<256x128xf32>
    %5 = tpu.matmul %4, %3, %cst {dimension_numbers = #tpu.dot_dimension_numbers<[1], [0], [0], [1], [0, 0, 1, 1], [], []>} : vector<256x256xbf16>, vector<256x128xbf16>, vector<256x128xf32> -> vector<256x128xf32>
    %c0_4 = arith.constant 0 : index
    %c0_5 = arith.constant 0 : index
    %6 = vector.load %arg10[%c0_4, %c0_5] : memref<256x1xf32, #tpu.memory_space<vmem>>, vector<256x1xf32>
    %7 = vector.broadcast %6 : vector<256x1xf32> to vector<256x128xf32>
    %8 = arith.addf %5, %7 : vector<256x128xf32>
    %cst_6 = arith.constant 0.000000e+00 : f32
    %9 = vector.broadcast %cst_6 : f32 to vector<256x128xf32>
    %10 = arith.maximumf %8, %9 : vector<256x128xf32>
    %11 = arith.truncf %10 : vector<256x128xf32> to vector<256x128xbf16>
    %c0_7 = arith.constant 0 : index
    %c0_8 = arith.constant 0 : index
    %12 = vector.load %arg11[%c0_7, %c0_8] : memref<256x256xbf16, #tpu.memory_space<vmem>>, vector<256x256xbf16>
    %cst_9 = arith.constant dense<0.000000e+00> : vector<256x128xf32>
    %13 = tpu.matmul %12, %11, %cst_9 {dimension_numbers = #tpu.dot_dimension_numbers<[1], [0], [0], [1], [0, 0, 1, 1], [], []>} : vector<256x256xbf16>, vector<256x128xbf16>, vector<256x128xf32> -> vector<256x128xf32>
    %c0_10 = arith.constant 0 : index
    %c0_11 = arith.constant 0 : index
    %14 = vector.load %arg12[%c0_10, %c0_11] : memref<256x1xf32, #tpu.memory_space<vmem>>, vector<256x1xf32>
    %15 = vector.broadcast %14 : vector<256x1xf32> to vector<256x128xf32>
    %16 = arith.addf %13, %15 : vector<256x128xf32>
    %cst_12 = arith.constant 0.000000e+00 : f32
    %17 = vector.broadcast %cst_12 : f32 to vector<256x128xf32>
    %18 = arith.maximumf %16, %17 : vector<256x128xf32>
    %c0_13 = arith.constant 0 : index
    %c0_14 = arith.constant 0 : index
    %19 = vector.load %arg14[%c0_13, %c0_14] : memref<8x256xf32, #tpu.memory_space<vmem>>, vector<8x256xf32>
    %cst_15 = arith.constant dense<0.000000e+00> : vector<8x128xf32>
    %20 = tpu.matmul %19, %18, %cst_15 {dimension_numbers = #tpu.dot_dimension_numbers<[1], [0], [0], [1], [0, 0, 1, 1], [], []>} : vector<8x256xf32>, vector<256x128xf32>, vector<8x128xf32> -> vector<8x128xf32>
    %c128_i32 = arith.constant 128 : i32
    %21 = arith.muli %arg1, %c128_i32 : i32
    %22 = tpu.iota {dimensions = array<i32: 1>} : vector<8x128xi32>
    %23 = vector.broadcast %21 : i32 to vector<8x128xi32>
    %24 = arith.addi %23, %22 : vector<8x128xi32>
    %c0_16 = arith.constant 0 : index
    %c0_17 = arith.constant 0 : index
    %25 = vector.load %arg3[%c0_16, %c0_17] : memref<8x1xi32, #tpu.memory_space<vmem>>, vector<8x1xi32>
    %26 = vector.broadcast %25 : vector<8x1xi32> to vector<8x128xi32>
    %27 = arith.cmpi sge, %24, %26 : vector<8x128xi32>
    %cst_18 = arith.constant 0.000000e+00 : f32
    %28 = vector.broadcast %cst_18 : f32 to vector<8x128xf32>
    %29 = arith.select %27, %28, %20 : vector<8x128xi1>, vector<8x128xf32>
    %c0_19 = arith.constant 0 : index
    %c0_20 = arith.constant 0 : index
    %30 = vector.load %arg13[%c0_19, %c0_20] : memref<8x128xf32, #tpu.memory_space<vmem>>, vector<8x128xf32>
    tpu.vector_store %arg13[%c0_19, %c0_20], %29 {strides = array<i32>} : memref<8x128xf32, #tpu.memory_space<vmem>>, vector<8x128xf32>,
    return
  }
  func.func @transform_0(%arg0: i32, %arg1: i32) -> (i32, i32) {
    %c0_i32 = arith.constant 0 : i32
    %c0_i32_0 = arith.constant 0 : i32
    return %arg0, %c0_i32 : i32, i32
  }
  func.func @transform_1(%arg0: i32, %arg1: i32) -> (i32, i32) {
    %c0_i32 = arith.constant 0 : i32
    %c0_i32_0 = arith.constant 0 : i32
    return %arg0, %c0_i32 : i32, i32
  }
  func.func @transform_2(%arg0: i32, %arg1: i32) -> (i32, i32) {
    %c0_i32 = arith.constant 0 : i32
    return %arg0, %arg1 : i32, i32
  }
  func.func @transform_3(%arg0: i32, %arg1: i32) -> (i32, i32) {
    %c0_i32 = arith.constant 0 : i32
    %c0_i32_0 = arith.constant 0 : i32
    %c0_i32_1 = arith.constant 0 : i32
    return %c0_i32, %c0_i32_0 : i32, i32
  }
  func.func @transform_4(%arg0: i32, %arg1: i32) -> (i32, i32) {
    %c0_i32 = arith.constant 0 : i32
    %c0_i32_0 = arith.constant 0 : i32
    %c0_i32_1 = arith.constant 0 : i32
    return %c0_i32, %c0_i32_0 : i32, i32
  }
  func.func @transform_5(%arg0: i32, %arg1: i32) -> (i32, i32) {
    %c0_i32 = arith.constant 0 : i32
    %c0_i32_0 = arith.constant 0 : i32
    %c0_i32_1 = arith.constant 0 : i32
    return %c0_i32, %c0_i32_0 : i32, i32
  }
  func.func @transform_6(%arg0: i32, %arg1: i32) -> (i32, i32) {
    %c0_i32 = arith.constant 0 : i32
    %c0_i32_0 = arith.constant 0 : i32
    %c0_i32_1 = arith.constant 0 : i32
    return %c0_i32, %c0_i32_0 : i32, i32
  }
  func.func @transform_7(%arg0: i32, %arg1: i32) -> (i32, i32) {
    %c0_i32 = arith.constant 0 : i32
    %c0_i32_0 = arith.constant 0 : i32
    %c0_i32_1 = arith.constant 0 : i32
    return %c0_i32, %c0_i32_0 : i32, i32
  }
  func.func @transform_8(%arg0: i32, %arg1: i32) -> (i32, i32) {
    %c0_i32 = arith.constant 0 : i32
    %c0_i32_0 = arith.constant 0 : i32
    %c0_i32_1 = arith.constant 0 : i32
    return %c0_i32, %c0_i32_0 : i32, i32
  }
  func.func @transform_9(%arg0: i32, %arg1: i32) -> (i32, i32) {
    %c0_i32 = arith.constant 0 : i32
    %c0_i32_0 = arith.constant 0 : i32
    %c0_i32_1 = arith.constant 0 : i32
    return %c0_i32, %c0_i32_0 : i32, i32
  }
  func.func @transform_10(%arg0: i32, %arg1: i32) -> (i32, i32) {
    %c0_i32 = arith.constant 0 : i32
    %c0_i32_0 = arith.constant 0 : i32
    %c0_i32_1 = arith.constant 0 : i32
    return %c0_i32, %c0_i32_0 : i32, i32
  }
  func.func @transform_11(%arg0: i32, %arg1: i32) -> (i32, i32) {
    %c0_i32 = arith.constant 0 : i32
    return %arg0, %arg1 : i32, i32
  }
}

</mosaic_0001>

<llo_original>
// kernel: tpu_custom_call.1
$region0: #{tpu_custom_call.1}
  #allocation0 [shape = 'u32[]', space=smem, size = 0x4, offset = 0x4, fixed_abs, tag = 'smem constant byte address 0x4 - core index']
  #allocation1 [shape = 'u32[144,128]{1,0:T(1,128)}', space=vmem, size = 0x12000, scoped, tag = 'internal scratch']
  #allocation2 [shape = 'f32[8,256]{1,0:T(8,128)}', space=vmem, size = 0x2000, scoped, tag = 'scratch operand']
  %s0 = inlined_call_operand.hbm [shape: bf16[16,32], index: 0, kind: input, shape index: {}]
  %s1 = inlined_call_operand.vmem [shape: s32[16,1], index: 1, kind: input, shape index: {}]
  %s2 = inlined_call_operand.vmem [shape: bf16[512,256], index: 2, kind: input, shape index: {}]
  %s3 = inlined_call_operand.hbm [shape: bf16[32,32], index: 3, kind: input, shape index: {}]
  %s4 = inlined_call_operand.hbm [shape: f32[1,32], index: 4, kind: input, shape index: {}]
  %s5 = inlined_call_operand.vmem [shape: bf16[32,256], index: 5, kind: input, shape index: {}]
  %s6 = inlined_call_operand.vmem [shape: f32[1,256], index: 6, kind: input, shape index: {}]
  %s7 = inlined_call_operand.hbm [shape: bf16[256,256], index: 7, kind: input, shape index: {}]
  %s8 = inlined_call_operand.vmem [shape: f32[256,1], index: 8, kind: input, shape index: {}]
  %s9 = inlined_call_operand.hbm [shape: bf16[256,256], index: 9, kind: input, shape index: {}]
  %s10 = inlined_call_operand.vmem [shape: f32[256,1], index: 10, kind: input, shape index: {}]
  %s11 = inlined_call_operand.hbm [shape: f32[16,256], index: 11, kind: output, shape index: {}]
  %s12 = sld [smem:[#allocation0]]
  $region142: #{tpu_custom_call.1} parent=0
    _
  %s14 = ssub.s32 1, %s12
  %s15 = scalar_select 0, %s14, %s12
  $region1: #{tpu_custom_call.1} parent=0
    #allocation3 [shape = 'u8[4096]{0}', space=vmem, size = 0x1000, scoped, tag = 'input window, operand 0']
    #allocation4 [shape = 's32[2]{0}', space=sflag, size = 0x8, scoped, tag = 'scoped memory for tpu_custom_call.1']
    #allocation5 [shape = 's32[2]{0}', space=sflag, size = 0x8, scoped, tag = 'scoped memory for tpu_custom_call.1']
    #allocation6 [shape = 'u8[131072]{0}', space=vmem, size = 0x20000, scoped, tag = 'input window, operand 2']
    #allocation7 [shape = 'u8[8192]{0}', space=vmem, size = 0x2000, scoped, tag = 'input window, operand 3, single buffered']
    #allocation8 [shape = 's32[1]{0}', space=sflag, size = 0x4, scoped, tag = 'scoped memory for tpu_custom_call.1']
    #allocation9 [shape = 'u8[512]{0}', space=vmem, size = 0x400, scoped, tag = 'input window, operand 4, single buffered']
    #allocation10 [shape = 'u8[131072]{0}', space=vmem, size = 0x20000, scoped, tag = 'input window, operand 7, single buffered']
    #allocation11 [shape = 's32[1]{0}', space=sflag, size = 0x4, scoped, tag = 'scoped memory for tpu_custom_call.1']
    #allocation12 [shape = 'u8[131072]{0}', space=vmem, size = 0x20000, scoped, tag = 'input window, operand 9, single buffered']
    #allocation13 [shape = 'u8[8192]{0}', space=vmem, size = 0x2000, scoped, tag = 'output window, operand 0']
    %16 = vsyncpa [#allocation4], 0
    %s17 = scalar_lea.sflag [#allocation4], 1
    %18 = vsyncpa %s17, 0
    %19 = vsyncpa [#allocation8], 0
    %20 = vsyncpa [#allocation11], 0
    %21 = vsyncpa [#allocation5], 0
    %s22 = scalar_lea.sflag [#allocation5], 1
    %23 = vsyncpa %s22, 0
    loop: start=0, step=1, limit=6
    $region2: #{tpu_custom_call.1} parent=1 // loop_pre_header
      _
    $region3: #{tpu_custom_call.1} parent=1 // loop_header
      %s25 = sphi 0, %s29
      %p26 = scmp.ge.s32.totalorder %s25, 6
      %s32 = sphi 0, %s44
      %s33 = sphi 0, %s40
      %s34 = sphi 0, %s32
      %s35 = sphi 0, %s33
      %s36 = sphi 0, %s34
      %s37 = sphi 0, %s35
      %s47 = sphi 0, %s49
      %s50 = sphi 0, %s47
      %s51 = sphi 0, %s50
      %s67 = sphi 0, %s51
      %s73 = sphi 0, %s75
      %s76 = sphi 0, %s73
      %s77 = sphi 0, %s76
      %s93 = sphi 0, %s77
      %s101 = sphi 0, %s103
      %s104 = sphi 0, %s101
      %s105 = sphi 0, %s104
      %s121 = sphi 0, %s105
      %s125 = sphi 0, %s125
      %s127 = sphi 0, %s125
      %s128 = sphi 0, %s127
      %s142 = sphi 0, %s128
      %s146 = sphi 0, %s146
      %s148 = sphi 0, %s146
      %s149 = sphi 0, %s148
      %s163 = sphi 0, %s149
      %s167 = sphi 0, %s167
      %s169 = sphi 0, %s167
      %s170 = sphi 0, %s169
      %s184 = sphi 0, %s170
      %s188 = sphi 0, %s188
      %s190 = sphi 0, %s188
      %s191 = sphi 0, %s190
      %s205 = sphi 0, %s191
      %s209 = sphi 0, %s209
      %s211 = sphi 0, %s209
      %s212 = sphi 0, %s211
      %s226 = sphi 0, %s212
      %s230 = sphi 0, %s230
      %s232 = sphi 0, %s230
      %s233 = sphi 0, %s232
      %s247 = sphi 0, %s233
      %s251 = sphi 0, %s251
      %s253 = sphi 0, %s251
      %s254 = sphi 0, %s253
      %s268 = sphi 0, %s254
      %s272 = sphi 0, %s272
      %s274 = sphi 0, %s272
      %s275 = sphi 0, %s274
      %s289 = sphi 0, %s275
      %s297 = sphi 0, %s299
      %s300 = sphi 0, %s297
      %s301 = sphi 0, %s300
      %s317 = sphi 0, %s301
    $region4: #{tpu_custom_call.1} parent=1 // loop_header_branch
      %28 = sbr.rel (%p26) target = $region8
    $region5: #{tpu_custom_call.1} parent=1 // loop_body
      %s30 = ssub.s32 %s25, 1
      %s31 = ssub.s32 %s25, 2
      %s38 = sadd.s32 1, %s33
      %p39 = scmp.ge.s32.totalorder %s38, 2
      %s40 = scalar_select %p39, 0, %s38
      %s41 = sadd.s32 1, %s32
      %s42 = scalar_select %p39, %s41, %s32
      %p43 = scmp.ge.s32.totalorder %s42, 2
      %s44 = scalar_select %p43, 0, %s42
      %s45 = ssub.s32 %s32, %s44
      %p46 = scmp.eq.s32.totalorder %s45, 0
      %s48 = sadd.s32 %s47, 1
      %s49 = scalar_select %p46, %s47, %s48
      %p52 = pneg %p46
      %p53 = scmp.eq.s32.totalorder %s25, 3
      %p54 = por %p52, %p53
      %p55 = scmp.ne.s32.totalorder %s47, %s50
      %p56 = scmp.eq.s32.totalorder %s25, 0
      %p57 = por %p55, %p56
      %p58 = scmp.ne.s32.totalorder %s47, %s50
      %p59 = scmp.eq.s32.totalorder %s30, 3
      %p60 = por %p58, %p59
      %p61 = scmp.ne.s32.totalorder %s50, %s51
      %p62 = scmp.eq.s32.totalorder %s30, 0
      %p63 = por %p61, %p62
      %p64 = scmp.ne.s32.totalorder %s50, %s51
      %p65 = scmp.eq.s32.totalorder %s31, 3
      %p66 = por %p64, %p65
      %p68 = scmp.ne.s32.totalorder %s51, %s67
      %p69 = scmp.eq.s32.totalorder %s31, 0
      %p70 = por %p68, %p69
      %s71 = ssub.s32 %s32, %s44
      %p72 = scmp.eq.s32.totalorder %s71, 0
      %s74 = sadd.s32 %s73, 1
      %s75 = scalar_select %p72, %s73, %s74
      %p78 = pneg %p72
      %p79 = scmp.eq.s32.totalorder %s25, 3
      %p80 = por %p78, %p79
      %p81 = scmp.ne.s32.totalorder %s73, %s76
      %p82 = scmp.eq.s32.totalorder %s25, 0
      %p83 = por %p81, %p82
      %p84 = scmp.ne.s32.totalorder %s73, %s76
      %p85 = scmp.eq.s32.totalorder %s30, 3
      %p86 = por %p84, %p85
      %p87 = scmp.ne.s32.totalorder %s76, %s77
      %p88 = scmp.eq.s32.totalorder %s30, 0
      %p89 = por %p87, %p88
      %p90 = scmp.ne.s32.totalorder %s76, %s77
      %p91 = scmp.eq.s32.totalorder %s31, 3
      %p92 = por %p90, %p91
      %p94 = scmp.ne.s32.totalorder %s77, %s93
      %p95 = scmp.eq.s32.totalorder %s31, 0
      %p96 = por %p94, %p95
      %s97 = ssub.s32 %s32, %s44
      %s98 = ssub.s32 %s33, %s40
      %s99 = sor.u32 %s97, %s98
      %p100 = scmp.eq.s32.totalorder %s99, 0
      %s102 = sadd.s32 %s101, 1
      %s103 = scalar_select %p100, %s101, %s102
      %p106 = pneg %p100
      %p107 = scmp.eq.s32.totalorder %s25, 3
      %p108 = por %p106, %p107
      %p109 = scmp.ne.s32.totalorder %s101, %s104
      %p110 = scmp.eq.s32.totalorder %s25, 0
      %p111 = por %p109, %p110
      %p112 = scmp.ne.s32.totalorder %s101, %s104
      %p113 = scmp.eq.s32.totalorder %s30, 3
      %p114 = por %p112, %p113
      %p115 = scmp.ne.s32.totalorder %s104, %s105
      %p116 = scmp.eq.s32.totalorder %s30, 0
      %p117 = por %p115, %p116
      %p118 = scmp.ne.s32.totalorder %s104, %s105
      %p119 = scmp.eq.s32.totalorder %s31, 3
      %p120 = por %p118, %p119
      %p122 = scmp.ne.s32.totalorder %s105, %s121
      %p123 = scmp.eq.s32.totalorder %s31, 0
      %p124 = por %p122, %p123
      %s126 = sadd.s32 %s125, 1
      %p129 = scmp.eq.s32.totalorder %s25, 3
      %p130 = scmp.ne.s32.totalorder %s125, %s127
      %p131 = scmp.eq.s32.totalorder %s25, 0
      %p132 = por %p130, %p131
      %p133 = scmp.ne.s32.totalorder %s125, %s127
      %p134 = scmp.eq.s32.totalorder %s30, 3
      %p135 = por %p133, %p134
      %p136 = scmp.ne.s32.totalorder %s127, %s128
      %p137 = scmp.eq.s32.totalorder %s30, 0
      %p138 = por %p136, %p137
      %p139 = scmp.ne.s32.totalorder %s127, %s128
      %p140 = scmp.eq.s32.totalorder %s31, 3
      %p141 = por %p139, %p140
      %p143 = scmp.ne.s32.totalorder %s128, %s142
      %p144 = scmp.eq.s32.totalorder %s31, 0
      %p145 = por %p143, %p144
      %s147 = sadd.s32 %s146, 1
      %p150 = scmp.eq.s32.totalorder %s25, 3
      %p151 = scmp.ne.s32.totalorder %s146, %s148
      %p152 = scmp.eq.s32.totalorder %s25, 0
      %p153 = por %p151, %p152
      %p154 = scmp.ne.s32.totalorder %s146, %s148
      %p155 = scmp.eq.s32.totalorder %s30, 3
      %p156 = por %p154, %p155
      %p157 = scmp.ne.s32.totalorder %s148, %s149
      %p158 = scmp.eq.s32.totalorder %s30, 0
      %p159 = por %p157, %p158
      %p160 = scmp.ne.s32.totalorder %s148, %s149
      %p161 = scmp.eq.s32.totalorder %s31, 3
      %p162 = por %p160, %p161
      %p164 = scmp.ne.s32.totalorder %s149, %s163
      %p165 = scmp.eq.s32.totalorder %s31, 0
      %p166 = por %p164, %p165
      %s168 = sadd.s32 %s167, 1
      %p171 = scmp.eq.s32.totalorder %s25, 3
      %p172 = scmp.ne.s32.totalorder %s167, %s169
      %p173 = scmp.eq.s32.totalorder %s25, 0
      %p174 = por %p172, %p173
      %p175 = scmp.ne.s32.totalorder %s167, %s169
      %p176 = scmp.eq.s32.totalorder %s30, 3
      %p177 = por %p175, %p176
      %p178 = scmp.ne.s32.totalorder %s169, %s170
      %p179 = scmp.eq.s32.totalorder %s30, 0
      %p180 = por %p178, %p179
      %p181 = scmp.ne.s32.totalorder %s169, %s170
      %p182 = scmp.eq.s32.totalorder %s31, 3
      %p183 = por %p181, %p182
      %p185 = scmp.ne.s32.totalorder %s170, %s184
      %p186 = scmp.eq.s32.totalorder %s31, 0
      %p187 = por %p185, %p186
      %s189 = sadd.s32 %s188, 1
      %p192 = scmp.eq.s32.totalorder %s25, 3
      %p193 = scmp.ne.s32.totalorder %s188, %s190
      %p194 = scmp.eq.s32.totalorder %s25, 0
      %p195 = por %p193, %p194
      %p196 = scmp.ne.s32.totalorder %s188, %s190
      %p197 = scmp.eq.s32.totalorder %s30, 3
      %p198 = por %p196, %p197
      %p199 = scmp.ne.s32.totalorder %s190, %s191
      %p200 = scmp.eq.s32.totalorder %s30, 0
      %p201 = por %p199, %p200
      %p202 = scmp.ne.s32.totalorder %s190, %s191
      %p203 = scmp.eq.s32.totalorder %s31, 3
      %p204 = por %p202, %p203
      %p206 = scmp.ne.s32.totalorder %s191, %s205
      %p207 = scmp.eq.s32.totalorder %s31, 0
      %p208 = por %p206, %p207
      %s210 = sadd.s32 %s209, 1
      %p213 = scmp.eq.s32.totalorder %s25, 3
      %p214 = scmp.ne.s32.totalorder %s209, %s211
      %p215 = scmp.eq.s32.totalorder %s25, 0
      %p216 = por %p214, %p215
      %p217 = scmp.ne.s32.totalorder %s209, %s211
      %p218 = scmp.eq.s32.totalorder %s30, 3
      %p219 = por %p217, %p218
      %p220 = scmp.ne.s32.totalorder %s211, %s212
      %p221 = scmp.eq.s32.totalorder %s30, 0
      %p222 = por %p220, %p221
      %p223 = scmp.ne.s32.totalorder %s211, %s212
      %p224 = scmp.eq.s32.totalorder %s31, 3
      %p225 = por %p223, %p224
      %p227 = scmp.ne.s32.totalorder %s212, %s226
      %p228 = scmp.eq.s32.totalorder %s31, 0
      %p229 = por %p227, %p228
      %s231 = sadd.s32 %s230, 1
      %p234 = scmp.eq.s32.totalorder %s25, 3
      %p235 = scmp.ne.s32.totalorder %s230, %s232
      %p236 = scmp.eq.s32.totalorder %s25, 0
      %p237 = por %p235, %p236
      %p238 = scmp.ne.s32.totalorder %s230, %s232
      %p239 = scmp.eq.s32.totalorder %s30, 3
      %p240 = por %p238, %p239
      %p241 = scmp.ne.s32.totalorder %s232, %s233
      %p242 = scmp.eq.s32.totalorder %s30, 0
      %p243 = por %p241, %p242
      %p244 = scmp.ne.s32.totalorder %s232, %s233
      %p245 = scmp.eq.s32.totalorder %s31, 3
      %p246 = por %p244, %p245
      %p248 = scmp.ne.s32.totalorder %s233, %s247
      %p249 = scmp.eq.s32.totalorder %s31, 0
      %p250 = por %p248, %p249
      %s252 = sadd.s32 %s251, 1
      %p255 = scmp.eq.s32.totalorder %s25, 3
      %p256 = scmp.ne.s32.totalorder %s251, %s253
      %p257 = scmp.eq.s32.totalorder %s25, 0
      %p258 = por %p256, %p257
      %p259 = scmp.ne.s32.totalorder %s251, %s253
      %p260 = scmp.eq.s32.totalorder %s30, 3
      %p261 = por %p259, %p260
      %p262 = scmp.ne.s32.totalorder %s253, %s254
      %p263 = scmp.eq.s32.totalorder %s30, 0
      %p264 = por %p262, %p263
      %p265 = scmp.ne.s32.totalorder %s253, %s254
      %p266 = scmp.eq.s32.totalorder %s31, 3
      %p267 = por %p265, %p266
      %p269 = scmp.ne.s32.totalorder %s254, %s268
      %p270 = scmp.eq.s32.totalorder %s31, 0
      %p271 = por %p269, %p270
      %s273 = sadd.s32 %s272, 1
      %p276 = scmp.eq.s32.totalorder %s25, 3
      %p277 = scmp.ne.s32.totalorder %s272, %s274
      %p278 = scmp.eq.s32.totalorder %s25, 0
      %p279 = por %p277, %p278
      %p280 = scmp.ne.s32.totalorder %s272, %s274
      %p281 = scmp.eq.s32.totalorder %s30, 3
      %p282 = por %p280, %p281
      %p283 = scmp.ne.s32.totalorder %s274, %s275
      %p284 = scmp.eq.s32.totalorder %s30, 0
      %p285 = por %p283, %p284
      %p286 = scmp.ne.s32.totalorder %s274, %s275
      %p287 = scmp.eq.s32.totalorder %s31, 3
      %p288 = por %p286, %p287
      %p290 = scmp.ne.s32.totalorder %s275, %s289
      %p291 = scmp.eq.s32.totalorder %s31, 0
      %p292 = por %p290, %p291
      %s293 = ssub.s32 %s32, %s44
      %s294 = ssub.s32 %s33, %s40
      %s295 = sor.u32 %s293, %s294
      %p296 = scmp.eq.s32.totalorder %s295, 0
      %s298 = sadd.s32 %s297, 1
      %s299 = scalar_select %p296, %s297, %s298
      %p302 = pneg %p296
      %p303 = scmp.eq.s32.totalorder %s25, 3
      %p304 = por %p302, %p303
      %p305 = scmp.ne.s32.totalorder %s297, %s300
      %p306 = scmp.eq.s32.totalorder %s25, 0
      %p307 = por %p305, %p306
      %p308 = scmp.ne.s32.totalorder %s297, %s300
      %p309 = scmp.eq.s32.totalorder %s30, 3
      %p310 = por %p308, %p309
      %p311 = scmp.ne.s32.totalorder %s300, %s301
      %p312 = scmp.eq.s32.totalorder %s30, 0
      %p313 = por %p311, %p312
      %p314 = scmp.ne.s32.totalorder %s300, %s301
      %p315 = scmp.eq.s32.totalorder %s31, 3
      %p316 = por %p314, %p315
      %p318 = scmp.ne.s32.totalorder %s301, %s317
      %p319 = scmp.eq.s32.totalorder %s31, 0
      %p320 = por %p318, %p319
      %p321 = scmp.le.s32.totalorder 1, %s25
      %p322 = scmp.lt.s32.totalorder %s25, 5
      %p323 = pnand %p321, %p322
      %p324 = pneg %p323
      // Predicated region
      $region9: #{tpu_custom_call.1} parent=5 // pred_check
        _
      $region10: #{tpu_custom_call.1} parent=5 // pred_check_branch
        %326 = sbr.rel (%p323) target = $region12
      $region11: #{tpu_custom_call.1} parent=5 // pred_region
        %s327 = ssub.s32 %s25, 1
        // Predicated region
        $region13: #{tpu_custom_call.1} parent=11 // pred_check
          %p328 = pneg %p138
        $region14: #{tpu_custom_call.1} parent=11 // pred_check_branch
          %330 = sbr.rel (%p328) target = $region16
        $region15: #{tpu_custom_call.1} parent=11 // pred_region
          %s332 = ssub.s32 256, 256
          %333 = vsyncadd [#allocation8], %s332
          %s334 = sshll.u32 [#allocation7], 4
          %s335 = int_to_ptr.vmem [resolvable:$true] %s334
          %340 = dma.hbm_to_vmem [thread:$0]  %s3, 256, %s335, [#allocation8], 64, 64, 4
        $region16: #{tpu_custom_call.1} parent=11 // pred_fallthru
          _
        // Predicated region
        $region17: #{tpu_custom_call.1} parent=11 // pred_check
          %p341 = pneg %p159
        $region18: #{tpu_custom_call.1} parent=11 // pred_check_branch
          %343 = sbr.rel (%p341) target = $region20
        $region19: #{tpu_custom_call.1} parent=11 // pred_region
          %s345 = ssub.s32 16, 16
          %346 = vsyncadd [#allocation8], %s345
          %s348 = sshll.u32 [#allocation9], 4
          %s349 = int_to_ptr.vmem [resolvable:$true] %s348
          %351 = dma.hbm_to_vmem [thread:$0]  %s4, 16, %s349, [#allocation8]
        $region20: #{tpu_custom_call.1} parent=11 // pred_fallthru
          _
        // Predicated region
        $region21: #{tpu_custom_call.1} parent=11 // pred_check
          %p352 = pneg %p180
        $region22: #{tpu_custom_call.1} parent=11 // pred_check_branch
          %354 = sbr.rel (%p352) target = $region24
        $region23: #{tpu_custom_call.1} parent=11 // pred_region
          _
        $region24: #{tpu_custom_call.1} parent=11 // pred_fallthru
          _
        // Predicated region
        $region25: #{tpu_custom_call.1} parent=11 // pred_check
          %p355 = pneg %p201
        $region26: #{tpu_custom_call.1} parent=11 // pred_check_branch
          %357 = sbr.rel (%p355) target = $region28
        $region27: #{tpu_custom_call.1} parent=11 // pred_region
          _
        $region28: #{tpu_custom_call.1} parent=11 // pred_fallthru
          _
        // Predicated region
        $region29: #{tpu_custom_call.1} parent=11 // pred_check
          %p358 = pneg %p222
        $region30: #{tpu_custom_call.1} parent=11 // pred_check_branch
          %360 = sbr.rel (%p358) target = $region32
        $region31: #{tpu_custom_call.1} parent=11 // pred_region
          %s362 = ssub.s32 4096, 4096
          %363 = vsyncadd [#allocation11], %s362
          %s364 = sshll.u32 [#allocation10], 4
          %s365 = int_to_ptr.vmem [resolvable:$true] %s364
          %370 = dma.hbm_to_vmem [thread:$0]  %s7, 4096, %s365, [#allocation11], 128, 128, 8
        $region32: #{tpu_custom_call.1} parent=11 // pred_fallthru
          _
        // Predicated region
        $region33: #{tpu_custom_call.1} parent=11 // pred_check
          %p371 = pneg %p243
        $region34: #{tpu_custom_call.1} parent=11 // pred_check_branch
          %373 = sbr.rel (%p371) target = $region36
        $region35: #{tpu_custom_call.1} parent=11 // pred_region
          _
        $region36: #{tpu_custom_call.1} parent=11 // pred_fallthru
          _
        // Predicated region
        $region37: #{tpu_custom_call.1} parent=11 // pred_check
          %p374 = pneg %p264
        $region38: #{tpu_custom_call.1} parent=11 // pred_check_branch
          %376 = sbr.rel (%p374) target = $region40
        $region39: #{tpu_custom_call.1} parent=11 // pred_region
          %s378 = ssub.s32 4096, 4096
          %379 = vsyncadd [#allocation11], %s378
          %s380 = sshll.u32 [#allocation12], 4
          %s381 = int_to_ptr.vmem [resolvable:$true] %s380
          %386 = dma.hbm_to_vmem [thread:$0]  %s9, 4096, %s381, [#allocation11], 128, 128, 8
        $region40: #{tpu_custom_call.1} parent=11 // pred_fallthru
          _
        // Predicated region
        $region41: #{tpu_custom_call.1} parent=11 // pred_check
          %p387 = pneg %p285
        $region42: #{tpu_custom_call.1} parent=11 // pred_check_branch
          %389 = sbr.rel (%p387) target = $region44
        $region43: #{tpu_custom_call.1} parent=11 // pred_region
          _
        $region44: #{tpu_custom_call.1} parent=11 // pred_fallthru
          _
      $region12: #{tpu_custom_call.1} parent=5 // pred_fallthru
        _
      %p390 = scmp.lt.s32.totalorder %s25, 4
      // Predicated region
      $region45: #{tpu_custom_call.1} parent=5 // pred_check
        %p391 = pneg %p390
      $region46: #{tpu_custom_call.1} parent=5 // pred_check_branch
        %393 = sbr.rel (%p391) target = $region48
      $region47: #{tpu_custom_call.1} parent=5 // pred_region
        // Predicated region
        $region49: #{tpu_custom_call.1} parent=47 // pred_check
          %p394 = pneg %p57
        $region50: #{tpu_custom_call.1} parent=47 // pred_check_branch
          %396 = sbr.rel (%p394) target = $region52
        $region51: #{tpu_custom_call.1} parent=47 // pred_region
          %s397 = sand.u32 %s47, 1
          %s398 = scalar_lea.sflag [#allocation4], %s397
          %s399 = sand.u32 %s47, 1
          %s400 = smul.addr %s399, 4
          %s401 = scalar_lea.vmem [#allocation3], %s400
          %s403 = ssub.s32 64, 64
          %404 = vsyncadd %s398, %s403
          %s405 = smul.addr %s32, 64
          %s406 = scalar_lea.hbm %s0, %s405
          %s408 = sshll.u32 %s401, 4
          %s409 = int_to_ptr.vmem [resolvable:$true] %s408
          %411 = dma.hbm_to_vmem [thread:$0]  %s406, 64, %s409, %s398
        $region52: #{tpu_custom_call.1} parent=47 // pred_fallthru
          _
        // Predicated region
        $region53: #{tpu_custom_call.1} parent=47 // pred_check
          %p412 = pneg %p83
        $region54: #{tpu_custom_call.1} parent=47 // pred_check_branch
          %414 = sbr.rel (%p412) target = $region56
        $region55: #{tpu_custom_call.1} parent=47 // pred_region
          %p415 = scmp.lt.s32.totalorder %s32, 1
          %s416 = scalar_select %p415, %s32, 1
          %s417 = smul.addr %s416, 8
          %s418 = scalar_lea.vmem %s1, %s417
        $region56: #{tpu_custom_call.1} parent=47 // pred_fallthru
          _
        // Predicated region
        $region57: #{tpu_custom_call.1} parent=47 // pred_check
          %p419 = pneg %p111
        $region58: #{tpu_custom_call.1} parent=47 // pred_check_branch
          %421 = sbr.rel (%p419) target = $region60
        $region59: #{tpu_custom_call.1} parent=47 // pred_region
          %s422 = sand.u32 %s101, 1
          %s423 = sand.u32 %s101, 1
          %s424 = smul.addr %s423, 128
          %s425 = scalar_lea.vmem [#allocation6], %s424
          %s426 = smul.u32 32, %s32
          %s427 = smul.addr %s426, 2
          %s428 = sadd.s32 %s33, %s427
          %s429 = smul.addr %s428, 4
          %s430 = scalar_lea.vmem %s2, %s429
          // Predicated region
          $region61: #{tpu_custom_call.1} parent=59 // pred_check
            _
          $region62: #{tpu_custom_call.1} parent=59 // pred_check_branch
            %432 = sbr.rel (0) target = $region64
          $region63: #{tpu_custom_call.1} parent=59 // pred_region
            // Predicated region
            $region65: #{tpu_custom_call.1} parent=63 // pred_check
              _
            $region66: #{tpu_custom_call.1} parent=63 // pred_check_branch
              %434 = sbr.rel target = $region68
            $region67: #{tpu_custom_call.1} parent=63 // pred_region
              // Predicated region
              $region80: #{tpu_custom_call.1} parent=67 // pred_check
                _
              $region81: #{tpu_custom_call.1} parent=67 // pred_check_branch
                %511 = sbr.rel (0) target = $region83
              $region82: #{tpu_custom_call.1} parent=67 // pred_region
                loop: start=0, step=1, limit=1
                $region84: #{tpu_custom_call.1} parent=82 // loop_pre_header
                  _
                $region85: #{tpu_custom_call.1} parent=82 // loop_header
                  %s513 = sphi 0, %s517
                  %p514 = scmp.ge.s32.totalorder %s513, 1
                  %s518 = sphi %s430, %s430
                  %s519 = sphi %s425, %s425
                $region86: #{tpu_custom_call.1} parent=82 // loop_header_branch
                  %516 = sbr.rel (%p514) target = $region90
                $region87: #{tpu_custom_call.1} parent=82 // loop_body
                  _
                $region88: #{tpu_custom_call.1} parent=82 // loop_footer
                  %s517 = sadd.s32 1, %s513
                $region89: #{tpu_custom_call.1} parent=82 // loop_footer_branch
                  %512 = sbr.rel target = $region85
                $region90: #{tpu_custom_call.1} parent=82 // loop_exit
                  _
                loop: start=0, step=1, limit=1
                $region91: #{tpu_custom_call.1} parent=82 // loop_pre_header
                  _
                $region92: #{tpu_custom_call.1} parent=82 // loop_header
                  %s522 = sphi 0, %s526
                  %p523 = scmp.ge.s32.totalorder %s522, 1
                  %s527 = sphi %s430, %s430
                  %s528 = sphi %s425, %s425
                $region93: #{tpu_custom_call.1} parent=82 // loop_header_branch
                  %525 = sbr.rel (%p523) target = $region97
                $region94: #{tpu_custom_call.1} parent=82 // loop_body
                  %v529 = vld [vmem:[%s527] sm:$0xf]
                  %530 = vst [vmem:[%s528] sm:$0xf] %v529
                  %v531 = vld [vmem:[%s527 + $0x8] sm:$0xf]
                  %532 = vst [vmem:[%s528 + $0x4] sm:$0xf] %v531
                  %v533 = vld [vmem:[%s527 + $0x10] sm:$0xf]
                  %534 = vst [vmem:[%s528 + $0x8] sm:$0xf] %v533
                  %v535 = vld [vmem:[%s527 + $0x18] sm:$0xf]
                  %536 = vst [vmem:[%s528 + $0xc] sm:$0xf] %v535
                  %v537 = vld [vmem:[%s527 + $0x20] sm:$0xf]
                  %538 = vst [vmem:[%s528 + $0x10] sm:$0xf] %v537
                  %v539 = vld [vmem:[%s527 + $0x28] sm:$0xf]
                  %540 = vst [vmem:[%s528 + $0x14] sm:$0xf] %v539
                  %v541 = vld [vmem:[%s527 + $0x30] sm:$0xf]
                  %542 = vst [vmem:[%s528 + $0x18] sm:$0xf] %v541
                  %v543 = vld [vmem:[%s527 + $0x38] sm:$0xf]
                  %544 = vst [vmem:[%s528 + $0x1c] sm:$0xf] %v543
                  %v545 = vld [vmem:[%s527 + $0x40] sm:$0xf]
                  %546 = vst [vmem:[%s528 + $0x20] sm:$0xf] %v545
                  %v547 = vld [vmem:[%s527 + $0x48] sm:$0xf]
                  %548 = vst [vmem:[%s528 + $0x24] sm:$0xf] %v547
                  %v549 = vld [vmem:[%s527 + $0x50] sm:$0xf]
                  %550 = vst [vmem:[%s528 + $0x28] sm:$0xf] %v549
                  %v551 = vld [vmem:[%s527 + $0x58] sm:$0xf]
                  %552 = vst [vmem:[%s528 + $0x2c] sm:$0xf] %v551
                  %v553 = vld [vmem:[%s527 + $0x60] sm:$0xf]
                  %554 = vst [vmem:[%s528 + $0x30] sm:$0xf] %v553
                  %v555 = vld [vmem:[%s527 + $0x68] sm:$0xf]
                  %556 = vst [vmem:[%s528 + $0x34] sm:$0xf] %v555
                  %v557 = vld [vmem:[%s527 + $0x70] sm:$0xf]
                  %558 = vst [vmem:[%s528 + $0x38] sm:$0xf] %v557
                  %v559 = vld [vmem:[%s527 + $0x78] sm:$0xf]
                  %560 = vst [vmem:[%s528 + $0x3c] sm:$0xf] %v559
                  %v561 = vld [vmem:[%s527 + $0x80] sm:$0xf]
                  %562 = vst [vmem:[%s528 + $0x40] sm:$0xf] %v561
                  %v563 = vld [vmem:[%s527 + $0x88] sm:$0xf]
                  %564 = vst [vmem:[%s528 + $0x44] sm:$0xf] %v563
                  %v565 = vld [vmem:[%s527 + $0x90] sm:$0xf]
                  %566 = vst [vmem:[%s528 + $0x48] sm:$0xf] %v565
                  %v567 = vld [vmem:[%s527 + $0x98] sm:$0xf]
                  %568 = vst [vmem:[%s528 + $0x4c] sm:$0xf] %v567
                  %v569 = vld [vmem:[%s527 + $0xa0] sm:$0xf]
                  %570 = vst [vmem:[%s528 + $0x50] sm:$0xf] %v569
                  %v571 = vld [vmem:[%s527 + $0xa8] sm:$0xf]
                  %572 = vst [vmem:[%s528 + $0x54] sm:$0xf] %v571
                  %v573 = vld [vmem:[%s527 + $0xb0] sm:$0xf]
                  %574 = vst [vmem:[%s528 + $0x58] sm:$0xf] %v573
                  %v575 = vld [vmem:[%s527 + $0xb8] sm:$0xf]
                  %576 = vst [vmem:[%s528 + $0x5c] sm:$0xf] %v575
                  %v577 = vld [vmem:[%s527 + $0xc0] sm:$0xf]
                  %578 = vst [vmem:[%s528 + $0x60] sm:$0xf] %v577
                  %v579 = vld [vmem:[%s527 + $0xc8] sm:$0xf]
                  %580 = vst [vmem:[%s528 + $0x64] sm:$0xf] %v579
                  %v581 = vld [vmem:[%s527 + $0xd0] sm:$0xf]
                  %582 = vst [vmem:[%s528 + $0x68] sm:$0xf] %v581
                  %v583 = vld [vmem:[%s527 + $0xd8] sm:$0xf]
                  %584 = vst [vmem:[%s528 + $0x6c] sm:$0xf] %v583
                  %v585 = vld [vmem:[%s527 + $0xe0] sm:$0xf]
                  %586 = vst [vmem:[%s528 + $0x70] sm:$0xf] %v585
                  %v587 = vld [vmem:[%s527 + $0xe8] sm:$0xf]
                  %588 = vst [vmem:[%s528 + $0x74] sm:$0xf] %v587
                  %v589 = vld [vmem:[%s527 + $0xf0] sm:$0xf]
                  %590 = vst [vmem:[%s528 + $0x78] sm:$0xf] %v589
                  %v591 = vld [vmem:[%s527 + $0xf8] sm:$0xf]
                  %592 = vst [vmem:[%s528 + $0x7c] sm:$0xf] %v591
                $region95: #{tpu_custom_call.1} parent=82 // loop_footer
                  %s526 = sadd.s32 1, %s522
                $region96: #{tpu_custom_call.1} parent=82 // loop_footer_branch
                  %521 = sbr.rel target = $region92
                $region97: #{tpu_custom_call.1} parent=82 // loop_exit
                  _
              $region83: #{tpu_custom_call.1} parent=67 // pred_fallthru
                _
            $region68: #{tpu_custom_call.1} parent=63 // pred_fallthru
              _
            // Predicated region
            $region69: #{tpu_custom_call.1} parent=63 // pred_check
              _
            $region70: #{tpu_custom_call.1} parent=63 // pred_check_branch
              %436 = sbr.rel (0) target = $region72
            $region71: #{tpu_custom_call.1} parent=63 // pred_region
              loop: start=0, step=1, limit=1
              $region73: #{tpu_custom_call.1} parent=71 // loop_pre_header
                _
              $region74: #{tpu_custom_call.1} parent=71 // loop_header
                %s439 = sphi 0, %s443
                %p440 = scmp.ge.s32.totalorder %s439, 1
                %s444 = sphi %s430, %s430
                %s445 = sphi %s425, %s425
              $region75: #{tpu_custom_call.1} parent=71 // loop_header_branch
                %442 = sbr.rel (%p440) target = $region79
              $region76: #{tpu_custom_call.1} parent=71 // loop_body
                %v446 = vld [vmem:[%s444] sm:$0xf]
                %447 = vst [vmem:[%s445] sm:$0xf] %v446
                %v448 = vld [vmem:[%s444 + $0x8] sm:$0xf]
                %449 = vst [vmem:[%s445 + $0x4] sm:$0xf] %v448
                %v450 = vld [vmem:[%s444 + $0x10] sm:$0xf]
                %451 = vst [vmem:[%s445 + $0x8] sm:$0xf] %v450
                %v452 = vld [vmem:[%s444 + $0x18] sm:$0xf]
                %453 = vst [vmem:[%s445 + $0xc] sm:$0xf] %v452
                %v454 = vld [vmem:[%s444 + $0x20] sm:$0xf]
                %455 = vst [vmem:[%s445 + $0x10] sm:$0xf] %v454
                %v456 = vld [vmem:[%s444 + $0x28] sm:$0xf]
                %457 = vst [vmem:[%s445 + $0x14] sm:$0xf] %v456
                %v458 = vld [vmem:[%s444 + $0x30] sm:$0xf]
                %459 = vst [vmem:[%s445 + $0x18] sm:$0xf] %v458
                %v460 = vld [vmem:[%s444 + $0x38] sm:$0xf]
                %461 = vst [vmem:[%s445 + $0x1c] sm:$0xf] %v460
                %v462 = vld [vmem:[%s444 + $0x40] sm:$0xf]
                %463 = vst [vmem:[%s445 + $0x20] sm:$0xf] %v462
                %v464 = vld [vmem:[%s444 + $0x48] sm:$0xf]
                %465 = vst [vmem:[%s445 + $0x24] sm:$0xf] %v464
                %v466 = vld [vmem:[%s444 + $0x50] sm:$0xf]
                %467 = vst [vmem:[%s445 + $0x28] sm:$0xf] %v466
                %v468 = vld [vmem:[%s444 + $0x58] sm:$0xf]
                %469 = vst [vmem:[%s445 + $0x2c] sm:$0xf] %v468
                %v470 = vld [vmem:[%s444 + $0x60] sm:$0xf]
                %471 = vst [vmem:[%s445 + $0x30] sm:$0xf] %v470
                %v472 = vld [vmem:[%s444 + $0x68] sm:$0xf]
                %473 = vst [vmem:[%s445 + $0x34] sm:$0xf] %v472
                %v474 = vld [vmem:[%s444 + $0x70] sm:$0xf]
                %475 = vst [vmem:[%s445 + $0x38] sm:$0xf] %v474
                %v476 = vld [vmem:[%s444 + $0x78] sm:$0xf]
                %477 = vst [vmem:[%s445 + $0x3c] sm:$0xf] %v476
                %v478 = vld [vmem:[%s444 + $0x80] sm:$0xf]
                %479 = vst [vmem:[%s445 + $0x40] sm:$0xf] %v478
                %v480 = vld [vmem:[%s444 + $0x88] sm:$0xf]
                %481 = vst [vmem:[%s445 + $0x44] sm:$0xf] %v480
                %v482 = vld [vmem:[%s444 + $0x90] sm:$0xf]
                %483 = vst [vmem:[%s445 + $0x48] sm:$0xf] %v482
                %v484 = vld [vmem:[%s444 + $0x98] sm:$0xf]
                %485 = vst [vmem:[%s445 + $0x4c] sm:$0xf] %v484
                %v486 = vld [vmem:[%s444 + $0xa0] sm:$0xf]
                %487 = vst [vmem:[%s445 + $0x50] sm:$0xf] %v486
                %v488 = vld [vmem:[%s444 + $0xa8] sm:$0xf]
                %489 = vst [vmem:[%s445 + $0x54] sm:$0xf] %v488
                %v490 = vld [vmem:[%s444 + $0xb0] sm:$0xf]
                %491 = vst [vmem:[%s445 + $0x58] sm:$0xf] %v490
                %v492 = vld [vmem:[%s444 + $0xb8] sm:$0xf]
                %493 = vst [vmem:[%s445 + $0x5c] sm:$0xf] %v492
                %v494 = vld [vmem:[%s444 + $0xc0] sm:$0xf]
                %495 = vst [vmem:[%s445 + $0x60] sm:$0xf] %v494
                %v496 = vld [vmem:[%s444 + $0xc8] sm:$0xf]
                %497 = vst [vmem:[%s445 + $0x64] sm:$0xf] %v496
                %v498 = vld [vmem:[%s444 + $0xd0] sm:$0xf]
                %499 = vst [vmem:[%s445 + $0x68] sm:$0xf] %v498
                %v500 = vld [vmem:[%s444 + $0xd8] sm:$0xf]
                %501 = vst [vmem:[%s445 + $0x6c] sm:$0xf] %v500
                %v502 = vld [vmem:[%s444 + $0xe0] sm:$0xf]
                %503 = vst [vmem:[%s445 + $0x70] sm:$0xf] %v502
                %v504 = vld [vmem:[%s444 + $0xe8] sm:$0xf]
                %505 = vst [vmem:[%s445 + $0x74] sm:$0xf] %v504
                %v506 = vld [vmem:[%s444 + $0xf0] sm:$0xf]
                %507 = vst [vmem:[%s445 + $0x78] sm:$0xf] %v506
                %v508 = vld [vmem:[%s444 + $0xf8] sm:$0xf]
                %509 = vst [vmem:[%s445 + $0x7c] sm:$0xf] %v508
              $region77: #{tpu_custom_call.1} parent=71 // loop_footer
                %s443 = sadd.s32 1, %s439
              $region78: #{tpu_custom_call.1} parent=71 // loop_footer_branch
                %438 = sbr.rel target = $region74
              $region79: #{tpu_custom_call.1} parent=71 // loop_exit
                _
            $region72: #{tpu_custom_call.1} parent=63 // pred_fallthru
              _
          $region64: #{tpu_custom_call.1} parent=59 // pred_fallthru
            _
          %593 = vnop
        $region60: #{tpu_custom_call.1} parent=47 // pred_fallthru
          _
      $region48: #{tpu_custom_call.1} parent=5 // pred_fallthru
        _
      %p594 = scmp.le.s32.totalorder 1, %s25
      %p595 = scmp.lt.s32.totalorder %s25, 5
      %p596 = pnand %p594, %p595
      %p597 = pneg %p596
      // Predicated region
      $region98: #{tpu_custom_call.1} parent=5 // pred_check
        _
      $region99: #{tpu_custom_call.1} parent=5 // pred_check_branch
        %599 = sbr.rel (%p596) target = $region101
      $region100: #{tpu_custom_call.1} parent=5 // pred_region
        %s600 = ssub.s32 %s25, 1
        %s601 = sand.u32 %s50, 1
        %s602 = scalar_lea.sflag [#allocation4], %s601
        %s603 = sand.u32 %s50, 1
        %s604 = smul.addr %s603, 4
        %s605 = scalar_lea.vmem [#allocation3], %s604
        // Predicated region
        $region102: #{tpu_custom_call.1} parent=100 // pred_check
          %p606 = pneg %p63
        $region103: #{tpu_custom_call.1} parent=100 // pred_check_branch
          %608 = sbr.rel (%p606) target = $region105
        $region104: #{tpu_custom_call.1} parent=100 // pred_region
          %609 = dma.done %s602, 64
        $region105: #{tpu_custom_call.1} parent=100 // pred_fallthru
          _
        %s610 = sand.u32 %s104, 1
        %s611 = sand.u32 %s104, 1
        %s612 = smul.addr %s611, 128
        %s613 = scalar_lea.vmem [#allocation6], %s612
        // Predicated region
        $region106: #{tpu_custom_call.1} parent=100 // pred_check
          %p614 = pneg %p117
        $region107: #{tpu_custom_call.1} parent=100 // pred_check_branch
          %616 = sbr.rel (%p614) target = $region109
        $region108: #{tpu_custom_call.1} parent=100 // pred_region
          _
        $region109: #{tpu_custom_call.1} parent=100 // pred_fallthru
          _
        // Predicated region
        $region110: #{tpu_custom_call.1} parent=100 // pred_check
          %p617 = pneg %p138
        $region111: #{tpu_custom_call.1} parent=100 // pred_check_branch
          %619 = sbr.rel (%p617) target = $region113
        $region112: #{tpu_custom_call.1} parent=100 // pred_region
          %620 = dma.done [#allocation8], 256
        $region113: #{tpu_custom_call.1} parent=100 // pred_fallthru
          _
        // Predicated region
        $region114: #{tpu_custom_call.1} parent=100 // pred_check
          %p621 = pneg %p159
        $region115: #{tpu_custom_call.1} parent=100 // pred_check_branch
          %623 = sbr.rel (%p621) target = $region117
        $region116: #{tpu_custom_call.1} parent=100 // pred_region
          %624 = dma.done [#allocation8], 16
        $region117: #{tpu_custom_call.1} parent=100 // pred_fallthru
          _
        // Predicated region
        $region118: #{tpu_custom_call.1} parent=100 // pred_check
          %p625 = pneg %p222
        $region119: #{tpu_custom_call.1} parent=100 // pred_check_branch
          %627 = sbr.rel (%p625) target = $region121
        $region120: #{tpu_custom_call.1} parent=100 // pred_region
          %628 = dma.done [#allocation11], 4096
        $region121: #{tpu_custom_call.1} parent=100 // pred_fallthru
          _
        // Predicated region
        $region122: #{tpu_custom_call.1} parent=100 // pred_check
          %p629 = pneg %p264
        $region123: #{tpu_custom_call.1} parent=100 // pred_check_branch
          %631 = sbr.rel (%p629) target = $region125
        $region124: #{tpu_custom_call.1} parent=100 // pred_region
          %632 = dma.done [#allocation11], 4096
        $region125: #{tpu_custom_call.1} parent=100 // pred_fallthru
          _
        %s633 = sand.u32 %s50, 1
        %s634 = scalar_lea.sflag [#allocation4], %s633
        %s635 = sand.u32 %s50, 1
        %s636 = smul.addr %s635, 4
        %s637 = scalar_lea.vmem [#allocation3], %s636
        %p638 = pneg %p63
        %p639 = pneg %p60
        %p640 = scmp.lt.s32.totalorder %s34, 1
        %s641 = scalar_select %p640, %s34, 1
        %s642 = smul.addr %s641, 8
        %s643 = scalar_lea.vmem %s1, %s642
        %p644 = pneg %p89
        %p645 = pneg %p86
        %s646 = sand.u32 %s104, 1
        %s647 = sand.u32 %s104, 1
        %s648 = smul.addr %s647, 128
        %s649 = scalar_lea.vmem [#allocation6], %s648
        %p650 = pneg %p117
        %p651 = pneg %p114
        %p652 = pneg %p138
        %p653 = pneg %p135
        %p654 = pneg %p159
        %p655 = pneg %p156
        %p656 = pneg %p180
        %p657 = pneg %p177
        %p658 = pneg %p201
        %p659 = pneg %p198
        %p660 = pneg %p222
        %p661 = pneg %p219
        %p662 = pneg %p243
        %p663 = pneg %p240
        %p664 = pneg %p264
        %p665 = pneg %p261
        %p666 = pneg %p285
        %p667 = pneg %p282
        %p668 = pneg %p313
        %p669 = pneg %p310
        %s670 = sand.u32 %s300, 1
        %s671 = scalar_lea.sflag [#allocation5], %s670
        %s672 = sand.u32 %s300, 1
        %s673 = smul.addr %s672, 8
        %s674 = scalar_lea.vmem [#allocation13], %s673
        %p675 = scmp.lt.s32.totalorder %s34, 1
        %s676 = scalar_select %p675, %s34, 1
        %s677 = smul.addr %s676, 8
        %s678 = scalar_lea.vmem %s1, %s677
        %s679 = smul.u32 32, %s34
        %p681 = scmp.eq.s32.totalorder %s35, 0
        // Predicated region
        $region126: #{tpu_custom_call.1} parent=100 // pred_check
          %p682 = pneg %p681
        $region127: #{tpu_custom_call.1} parent=100 // pred_check_branch
          %684 = sbr.rel (%p682) target = $region129
        $region128: #{tpu_custom_call.1} parent=100 // pred_region
          %v685 = vld [vmem:[%s605] sm:$0xf]
          %v686 = vld [vmem:[#allocation7] sm:$0xf]
          %v687 = vld [vmem:[#allocation7 + $0x4] sm:$0xf]
          %v688 = vld [vmem:[#allocation7 + $0x8] sm:$0xf]
          %v689 = vld [vmem:[#allocation7 + $0xc] sm:$0xf]
          %v690 = vld [vmem:[#allocation9] sm:$0x1]
          %v692 = vlaneseq
          %v693 = vshrl.u32 %v692, 7
          %v694 = vsub.s32 0, %v693
          %v695 = vrot.slane %v690, %v694
          %v701 = vunpack.c.l.b16 %v686
          %v702 = vunpack.c.l.b16 %v687
          %v703 = vunpack.c.l.b16 %v688
          %v704 = vunpack.c.l.b16 %v689
          %v705 = vpack.c.b16 %v702, %v701
          %v706 = vpack.c.b16 %v704, %v703
          %vm709 = vcmask 261120
          %v711 = vsel %vm709, %v685, 0
          %713 = vmatprep.subr.bf16.mxu0 0
          %714 = vmatpush1.bf16.msra.mxu0 %v705
          %715 = vmatprep.subr.bf16.mxu0 0
          %716 = vmatpush1.bf16.msra.mxu0 %v706
          %717 = vmatprep.subr.bf16.mxu0 0
          %718 = vmatpush1.bf16.msra.mxu0 0
          %719 = vmatprep.subr.bf16.mxu0 0
          %720 = vmatpush1.bf16.msra.mxu0 0
          %721 = vmatprep.subr.bf16.mxu0 0
          %722 = vmatpush1.bf16.msra.mxu0 0
          %723 = vmatprep.subr.bf16.mxu0 0
          %724 = vmatpush1.bf16.msra.mxu0 0
          %725 = vmatprep.subr.bf16.mxu0 0
          %726 = vmatpush1.bf16.msra.mxu0 0
          %727 = vmatprep.subr.bf16.mxu0 0
          %728 = vmatpush1.bf16.msra.mxu0 0
          %729 = vmatprep.subr.bf16.mxu0 0
          %730 = vmatpush1.bf16.msra.mxu0 0
          %731 = vmatprep.subr.bf16.mxu0 0
          %732 = vmatpush1.bf16.msra.mxu0 0
          %733 = vmatprep.subr.bf16.mxu0 0
          %734 = vmatpush1.bf16.msra.mxu0 0
          %735 = vmatprep.subr.bf16.mxu0 0
          %736 = vmatpush1.bf16.msra.mxu0 0
          %737 = vmatprep.subr.bf16.mxu0 0
          %738 = vmatpush1.bf16.msra.mxu0 0
          %739 = vmatprep.subr.bf16.mxu0 0
          %740 = vmatpush1.bf16.msra.mxu0 0
          %741 = vmatprep.subr.bf16.mxu0 0
          %742 = vmatpush1.bf16.msra.mxu0 0
          %743 = vmatprep.subr.bf16.mxu0 0
          %744 = vmatpush1.bf16.msra.mxu0 0
          %745 = vmatprep.mubr.bf16.mxu0 0
          %746 = vmatmul.mubr.bf16.gmra.mrb[0].mxu0 %v711
          %v747 = vpop.f32.mrb[0].mxu0
          %v748 = vadd.f32 %v695, %v747
          %v749 = vpop.f32.mrb[0].mxu0
          %v750 = vpop.f32.mrb[0].mxu0
          %v751 = vpop.f32.mrb[0].mxu0
          %752 = vdwg.mxu0
          %v753 = vmax.f32 %v748, 0.0
          %v754 = vpack.c.bf16 %v753, %v753
          %v755 = vld [vmem:[%s5] sm:$0xff]
          %v756 = vld [vmem:[%s5 + $0x8] sm:$0xff]
          %v757 = vld [vmem:[%s5 + $0x10] sm:$0xff]
          %v758 = vld [vmem:[%s5 + $0x18] sm:$0xff]
          %v759 = vld [vmem:[%s6] sm:$0x3]
          %v761 = vlaneseq
          %v762 = vshrl.u32 %v761, 7
          %v763 = vsub.s32 0, %v762
          %v764 = vrot.slane %v759, %v763
          %v765 = vlaneseq
          %v766 = vshrl.u32 %v765, 7
          %v767 = vsub.s32 1, %v766
          %v768 = vrot.slane %v759, %v767
          %v775 = vunpack.c.l.b16 %v755
          %v776 = vunpack.c.h.b16 %v755
          %v777 = vunpack.c.l.b16 %v756
          %v778 = vunpack.c.h.b16 %v756
          %v779 = vunpack.c.l.b16 %v757
          %v780 = vunpack.c.h.b16 %v757
          %v781 = vunpack.c.l.b16 %v758
          %v782 = vunpack.c.h.b16 %v758
          %v783 = vpack.c.b16 %v777, %v775
          %v784 = vpack.c.b16 %v778, %v776
          %v785 = vpack.c.b16 %v781, %v779
          %v786 = vpack.c.b16 %v782, %v780
          %v792 = vsel %vm709, %v754, 0
          %794 = vmatprep.subr.bf16.mxu0 %v784
          %795 = vmatpush1.bf16.msra.mxu0 %v783
          %796 = vmatprep.subr.bf16.mxu0 %v786
          %797 = vmatpush1.bf16.msra.mxu0 %v785
          %798 = vmatprep.subr.bf16.mxu0 0
          %799 = vmatpush1.bf16.msra.mxu0 0
          %800 = vmatprep.subr.bf16.mxu0 0
          %801 = vmatpush1.bf16.msra.mxu0 0
          %802 = vmatprep.subr.bf16.mxu0 0
          %803 = vmatpush1.bf16.msra.mxu0 0
          %804 = vmatprep.subr.bf16.mxu0 0
          %805 = vmatpush1.bf16.msra.mxu0 0
          %806 = vmatprep.subr.bf16.mxu0 0
          %807 = vmatpush1.bf16.msra.mxu0 0
          %808 = vmatprep.subr.bf16.mxu0 0
          %809 = vmatpush1.bf16.msra.mxu0 0
          %810 = vmatprep.subr.bf16.mxu0 0
          %811 = vmatpush1.bf16.msra.mxu0 0
          %812 = vmatprep.subr.bf16.mxu0 0
          %813 = vmatpush1.bf16.msra.mxu0 0
          %814 = vmatprep.subr.bf16.mxu0 0
          %815 = vmatpush1.bf16.msra.mxu0 0
          %816 = vmatprep.subr.bf16.mxu0 0
          %817 = vmatpush1.bf16.msra.mxu0 0
          %818 = vmatprep.subr.bf16.mxu0 0
          %819 = vmatpush1.bf16.msra.mxu0 0
          %820 = vmatprep.subr.bf16.mxu0 0
          %821 = vmatpush1.bf16.msra.mxu0 0
          %822 = vmatprep.subr.bf16.mxu0 0
          %823 = vmatpush1.bf16.msra.mxu0 0
          %824 = vmatprep.subr.bf16.mxu0 0
          %825 = vmatpush1.bf16.msra.mxu0 0
          %826 = vmatprep.mubr.bf16.mxu0 0
          %827 = vmatmul.mubr.bf16.gmra.mrb[0].mxu0 %v792
          %v828 = vpop.f32.mrb[0].mxu0
          %v829 = vadd.f32 %v764, %v828
          %v830 = vpop.f32.mrb[0].mxu0
          %v831 = vadd.f32 %v768, %v830
          %v832 = vpop.f32.mrb[0].mxu0
          %v833 = vpop.f32.mrb[0].mxu0
          %834 = vdwg.mxu0
          %v835 = vmax.f32 %v829, 0.0
          %v836 = vmax.f32 %v831, 0.0
          %v837 = vlaneseq
          %v838 = vand.u32 %v837, 127
          %v839 = vadd.s32 %v838, 128
          %v840 = vlaneseq
          %v841 = vshrl.u32 %v840, 7
          %v842 = vmul.u32 %v841, 32
          %vm843 = vcmp.ge.s32.totalorder %v838, %v842
          %vm844 = vcmp.ge.s32.totalorder %v839, %v842
          %v845 = vadd.s32 %v842, 32
          %vm846 = vcmp.lt.s32.totalorder %v838, %v845
          %vm847 = vcmp.lt.s32.totalorder %v839, %v845
          %vm848 = vmand %vm843, %vm846
          %vm849 = vmand %vm844, %vm847
          %v850 = vsel %vm848, %v835, 0.0
          %v851 = vsel %vm849, %v836, 0.0
          %852 = vst [vmem:[#allocation2] sm:$0xff] %v850
          %853 = vst [vmem:[#allocation2 + $0x8] sm:$0xff] %v851
        $region129: #{tpu_custom_call.1} parent=100 // pred_fallthru
          _
        %v854 = vld [vmem:[%s613] sm:$0xf]
        %v855 = vld [vmem:[%s613 + $0x4] sm:$0xf]
        %v856 = vld [vmem:[%s613 + $0x8] sm:$0xf]
        %v857 = vld [vmem:[%s613 + $0xc] sm:$0xf]
        %v858 = vld [vmem:[%s613 + $0x10] sm:$0xf]
        %v859 = vld [vmem:[%s613 + $0x14] sm:$0xf]
        %v860 = vld [vmem:[%s613 + $0x18] sm:$0xf]
        %v861 = vld [vmem:[%s613 + $0x1c] sm:$0xf]
        %v862 = vld [vmem:[%s613 + $0x20] sm:$0xf]
        %v863 = vld [vmem:[%s613 + $0x24] sm:$0xf]
        %v864 = vld [vmem:[%s613 + $0x28] sm:$0xf]
        %v865 = vld [vmem:[%s613 + $0x2c] sm:$0xf]
        %v866 = vld [vmem:[%s613 + $0x30] sm:$0xf]
        %v867 = vld [vmem:[%s613 + $0x34] sm:$0xf]
        %v868 = vld [vmem:[%s613 + $0x38] sm:$0xf]
        %v869 = vld [vmem:[%s613 + $0x3c] sm:$0xf]
        %v870 = vld [vmem:[%s613 + $0x40] sm:$0xf]
        %v871 = vld [vmem:[%s613 + $0x44] sm:$0xf]
        %v872 = vld [vmem:[%s613 + $0x48] sm:$0xf]
        %v873 = vld [vmem:[%s613 + $0x4c] sm:$0xf]
        %v874 = vld [vmem:[%s613 + $0x50] sm:$0xf]
        %v875 = vld [vmem:[%s613 + $0x54] sm:$0xf]
        %v876 = vld [vmem:[%s613 + $0x58] sm:$0xf]
        %v877 = vld [vmem:[%s613 + $0x5c] sm:$0xf]
        %v878 = vld [vmem:[%s613 + $0x60] sm:$0xf]
        %v879 = vld [vmem:[%s613 + $0x64] sm:$0xf]
        %v880 = vld [vmem:[%s613 + $0x68] sm:$0xf]
        %v881 = vld [vmem:[%s613 + $0x6c] sm:$0xf]
        %v882 = vld [vmem:[%s613 + $0x70] sm:$0xf]
        %v883 = vld [vmem:[%s613 + $0x74] sm:$0xf]
        %v884 = vld [vmem:[%s613 + $0x78] sm:$0xf]
        %v885 = vld [vmem:[%s613 + $0x7c] sm:$0xf]
        %v886 = vld [vmem:[#allocation10] sm:$0xff]
        %v887 = vld [vmem:[#allocation10 + $0x8] sm:$0xff]
        %v888 = vld [vmem:[#allocation10 + $0x10] sm:$0xff]
        %v889 = vld [vmem:[#allocation10 + $0x18] sm:$0xff]
        %v890 = vld [vmem:[#allocation10 + $0x20] sm:$0xff]
        %v891 = vld [vmem:[#allocation10 + $0x28] sm:$0xff]
        %v892 = vld [vmem:[#allocation10 + $0x30] sm:$0xff]
        %v893 = vld [vmem:[#allocation10 + $0x38] sm:$0xff]
        %v894 = vld [vmem:[#allocation10 + $0x40] sm:$0xff]
        %v895 = vld [vmem:[#allocation10 + $0x48] sm:$0xff]
        %v896 = vld [vmem:[#allocation10 + $0x50] sm:$0xff]
        %v897 = vld [vmem:[#allocation10 + $0x58] sm:$0xff]
        %v898 = vld [vmem:[#allocation10 + $0x60] sm:$0xff]
        %v899 = vld [vmem:[#allocation10 + $0x68] sm:$0xff]
        %v900 = vld [vmem:[#allocation10 + $0x70] sm:$0xff]
        %v901 = vld [vmem:[#allocation10 + $0x78] sm:$0xff]
        %v902 = vld [vmem:[#allocation10 + $0x80] sm:$0xff]
        %v903 = vld [vmem:[#allocation10 + $0x88] sm:$0xff]
        %v904 = vld [vmem:[#allocation10 + $0x90] sm:$0xff]
        %v905 = vld [vmem:[#allocation10 + $0x98] sm:$0xff]
        %v906 = vld [vmem:[#allocation10 + $0xa0] sm:$0xff]
        %v907 = vld [vmem:[#allocation10 + $0xa8] sm:$0xff]
        %v908 = vld [vmem:[#allocation10 + $0xb0] sm:$0xff]
        %v909 = vld [vmem:[#allocation10 + $0xb8] sm:$0xff]
        %v910 = vld [vmem:[#allocation10 + $0xc0] sm:$0xff]
        %v911 = vld [vmem:[#allocation10 + $0xc8] sm:$0xff]
        %v912 = vld [vmem:[#allocation10 + $0xd0] sm:$0xff]
        %v913 = vld [vmem:[#allocation10 + $0xd8] sm:$0xff]
        %v914 = vld [vmem:[#allocation10 + $0xe0] sm:$0xff]
        %v915 = vld [vmem:[#allocation10 + $0xe8] sm:$0xff]
        %v916 = vld [vmem:[#allocation10 + $0xf0] sm:$0xff]
        %v917 = vld [vmem:[#allocation10 + $0xf8] sm:$0xff]
        %v918 = vld [vmem:[%s8] sm:$0xff]
        %v919 = vld [vmem:[%s8 + $0x8] sm:$0xff]
        %v920 = vld [vmem:[%s8 + $0x10] sm:$0xff]
        %v921 = vld [vmem:[%s8 + $0x18] sm:$0xff]
        %v922 = vld [vmem:[%s8 + $0x20] sm:$0xff]
        %v923 = vld [vmem:[%s8 + $0x28] sm:$0xff]
        %v924 = vld [vmem:[%s8 + $0x30] sm:$0xff]
        %v925 = vld [vmem:[%s8 + $0x38] sm:$0xff]
        %v926 = vld [vmem:[%s8 + $0x40] sm:$0xff]
        %v927 = vld [vmem:[%s8 + $0x48] sm:$0xff]
        %v928 = vld [vmem:[%s8 + $0x50] sm:$0xff]
        %v929 = vld [vmem:[%s8 + $0x58] sm:$0xff]
        %v930 = vld [vmem:[%s8 + $0x60] sm:$0xff]
        %v931 = vld [vmem:[%s8 + $0x68] sm:$0xff]
        %v932 = vld [vmem:[%s8 + $0x70] sm:$0xff]
        %v933 = vld [vmem:[%s8 + $0x78] sm:$0xff]
        %v934 = vld [vmem:[%s8 + $0x80] sm:$0xff]
        %v935 = vld [vmem:[%s8 + $0x88] sm:$0xff]
        %v936 = vld [vmem:[%s8 + $0x90] sm:$0xff]
        %v937 = vld [vmem:[%s8 + $0x98] sm:$0xff]
        %v938 = vld [vmem:[%s8 + $0xa0] sm:$0xff]
        %v939 = vld [vmem:[%s8 + $0xa8] sm:$0xff]
        %v940 = vld [vmem:[%s8 + $0xb0] sm:$0xff]
        %v941 = vld [vmem:[%s8 + $0xb8] sm:$0xff]
        %v942 = vld [vmem:[%s8 + $0xc0] sm:$0xff]
        %v943 = vld [vmem:[%s8 + $0xc8] sm:$0xff]
        %v944 = vld [vmem:[%s8 + $0xd0] sm:$0xff]
        %v945 = vld [vmem:[%s8 + $0xd8] sm:$0xff]
        %v946 = vld [vmem:[%s8 + $0xe0] sm:$0xff]
        %v947 = vld [vmem:[%s8 + $0xe8] sm:$0xff]
        %v948 = vld [vmem:[%s8 + $0xf0] sm:$0xff]
        %v949 = vld [vmem:[%s8 + $0xf8] sm:$0xff]
        %951 = vset.pattern.permute.xlu0 0
        %952 = vperm.xlu0 %951, %v918
        %v953 = vpop.permute.xlu0 %952
        %956 = vset.pattern.permute.xlu0 0
        %957 = vperm.xlu0 %956, %v919
        %v958 = vpop.permute.xlu0 %957
        %961 = vset.pattern.permute.xlu0 0
        %962 = vperm.xlu0 %961, %v920
        %v963 = vpop.permute.xlu0 %962
        %966 = vset.pattern.permute.xlu0 0
        %967 = vperm.xlu0 %966, %v921
        %v968 = vpop.permute.xlu0 %967
        %971 = vset.pattern.permute.xlu0 0
        %972 = vperm.xlu0 %971, %v922
        %v973 = vpop.permute.xlu0 %972
        %976 = vset.pattern.permute.xlu0 0
        %977 = vperm.xlu0 %976, %v923
        %v978 = vpop.permute.xlu0 %977
        %981 = vset.pattern.permute.xlu0 0
        %982 = vperm.xlu0 %981, %v924
        %v983 = vpop.permute.xlu0 %982
        %986 = vset.pattern.permute.xlu0 0
        %987 = vperm.xlu0 %986, %v925
        %v988 = vpop.permute.xlu0 %987
        %991 = vset.pattern.permute.xlu0 0
        %992 = vperm.xlu0 %991, %v926
        %v993 = vpop.permute.xlu0 %992
        %996 = vset.pattern.permute.xlu0 0
        %997 = vperm.xlu0 %996, %v927
        %v998 = vpop.permute.xlu0 %997
        %1001 = vset.pattern.permute.xlu0 0
        %1002 = vperm.xlu0 %1001, %v928
        %v1003 = vpop.permute.xlu0 %1002
        %1006 = vset.pattern.permute.xlu0 0
        %1007 = vperm.xlu0 %1006, %v929
        %v1008 = vpop.permute.xlu0 %1007
        %1011 = vset.pattern.permute.xlu0 0
        %1012 = vperm.xlu0 %1011, %v930
        %v1013 = vpop.permute.xlu0 %1012
        %1016 = vset.pattern.permute.xlu0 0
        %1017 = vperm.xlu0 %1016, %v931
        %v1018 = vpop.permute.xlu0 %1017
        %1021 = vset.pattern.permute.xlu0 0
        %1022 = vperm.xlu0 %1021, %v932
        %v1023 = vpop.permute.xlu0 %1022
        %1026 = vset.pattern.permute.xlu0 0
        %1027 = vperm.xlu0 %1026, %v933
        %v1028 = vpop.permute.xlu0 %1027
        %1031 = vset.pattern.permute.xlu0 0
        %1032 = vperm.xlu0 %1031, %v934
        %v1033 = vpop.permute.xlu0 %1032
        %1036 = vset.pattern.permute.xlu0 0
        %1037 = vperm.xlu0 %1036, %v935
        %v1038 = vpop.permute.xlu0 %1037
        %1041 = vset.pattern.permute.xlu0 0
        %1042 = vperm.xlu0 %1041, %v936
        %v1043 = vpop.permute.xlu0 %1042
        %1046 = vset.pattern.permute.xlu0 0
        %1047 = vperm.xlu0 %1046, %v937
        %v1048 = vpop.permute.xlu0 %1047
        %1051 = vset.pattern.permute.xlu0 0
        %1052 = vperm.xlu0 %1051, %v938
        %v1053 = vpop.permute.xlu0 %1052
        %1056 = vset.pattern.permute.xlu0 0
        %1057 = vperm.xlu0 %1056, %v939
        %v1058 = vpop.permute.xlu0 %1057
        %1061 = vset.pattern.permute.xlu0 0
        %1062 = vperm.xlu0 %1061, %v940
        %v1063 = vpop.permute.xlu0 %1062
        %1066 = vset.pattern.permute.xlu0 0
        %1067 = vperm.xlu0 %1066, %v941
        %v1068 = vpop.permute.xlu0 %1067
        %1071 = vset.pattern.permute.xlu0 0
        %1072 = vperm.xlu0 %1071, %v942
        %v1073 = vpop.permute.xlu0 %1072
        %1076 = vset.pattern.permute.xlu0 0
        %1077 = vperm.xlu0 %1076, %v943
        %v1078 = vpop.permute.xlu0 %1077
        %1081 = vset.pattern.permute.xlu0 0
        %1082 = vperm.xlu0 %1081, %v944
        %v1083 = vpop.permute.xlu0 %1082
        %1086 = vset.pattern.permute.xlu0 0
        %1087 = vperm.xlu0 %1086, %v945
        %v1088 = vpop.permute.xlu0 %1087
        %1091 = vset.pattern.permute.xlu0 0
        %1092 = vperm.xlu0 %1091, %v946
        %v1093 = vpop.permute.xlu0 %1092
        %1096 = vset.pattern.permute.xlu0 0
        %1097 = vperm.xlu0 %1096, %v947
        %v1098 = vpop.permute.xlu0 %1097
        %1101 = vset.pattern.permute.xlu0 0
        %1102 = vperm.xlu0 %1101, %v948
        %v1103 = vpop.permute.xlu0 %1102
        %1106 = vset.pattern.permute.xlu0 0
        %1107 = vperm.xlu0 %1106, %v949
        %v1108 = vpop.permute.xlu0 %1107
        %v1142 = vunpack.c.l.b16 %v886
        %v1143 = vunpack.c.h.b16 %v886
        %v1144 = vunpack.c.l.b16 %v887
        %v1145 = vunpack.c.h.b16 %v887
        %v1146 = vunpack.c.l.b16 %v888
        %v1147 = vunpack.c.h.b16 %v888
        %v1148 = vunpack.c.l.b16 %v889
        %v1149 = vunpack.c.h.b16 %v889
        %v1150 = vunpack.c.l.b16 %v890
        %v1151 = vunpack.c.h.b16 %v890
        %v1152 = vunpack.c.l.b16 %v891
        %v1153 = vunpack.c.h.b16 %v891
        %v1154 = vunpack.c.l.b16 %v892
        %v1155 = vunpack.c.h.b16 %v892
        %v1156 = vunpack.c.l.b16 %v893
        %v1157 = vunpack.c.h.b16 %v893
        %v1158 = vunpack.c.l.b16 %v894
        %v1159 = vunpack.c.h.b16 %v894
        %v1160 = vunpack.c.l.b16 %v895
        %v1161 = vunpack.c.h.b16 %v895
        %v1162 = vunpack.c.l.b16 %v896
        %v1163 = vunpack.c.h.b16 %v896
        %v1164 = vunpack.c.l.b16 %v897
        %v1165 = vunpack.c.h.b16 %v897
        %v1166 = vunpack.c.l.b16 %v898
        %v1167 = vunpack.c.h.b16 %v898
        %v1168 = vunpack.c.l.b16 %v899
        %v1169 = vunpack.c.h.b16 %v899
        %v1170 = vunpack.c.l.b16 %v900
        %v1171 = vunpack.c.h.b16 %v900
        %v1172 = vunpack.c.l.b16 %v901
        %v1173 = vunpack.c.h.b16 %v901
        %v1174 = vunpack.c.l.b16 %v902
        %v1175 = vunpack.c.h.b16 %v902
        %v1176 = vunpack.c.l.b16 %v903
        %v1177 = vunpack.c.h.b16 %v903
        %v1178 = vunpack.c.l.b16 %v904
        %v1179 = vunpack.c.h.b16 %v904
        %v1180 = vunpack.c.l.b16 %v905
        %v1181 = vunpack.c.h.b16 %v905
        %v1182 = vunpack.c.l.b16 %v906
        %v1183 = vunpack.c.h.b16 %v906
        %v1184 = vunpack.c.l.b16 %v907
        %v1185 = vunpack.c.h.b16 %v907
        %v1186 = vunpack.c.l.b16 %v908
        %v1187 = vunpack.c.h.b16 %v908
        %v1188 = vunpack.c.l.b16 %v909
        %v1189 = vunpack.c.h.b16 %v909
        %v1190 = vunpack.c.l.b16 %v910
        %v1191 = vunpack.c.h.b16 %v910
        %v1192 = vunpack.c.l.b16 %v911
        %v1193 = vunpack.c.h.b16 %v911
        %v1194 = vunpack.c.l.b16 %v912
        %v1195 = vunpack.c.h.b16 %v912
        %v1196 = vunpack.c.l.b16 %v913
        %v1197 = vunpack.c.h.b16 %v913
        %v1198 = vunpack.c.l.b16 %v914
        %v1199 = vunpack.c.h.b16 %v914
        %v1200 = vunpack.c.l.b16 %v915
        %v1201 = vunpack.c.h.b16 %v915
        %v1202 = vunpack.c.l.b16 %v916
        %v1203 = vunpack.c.h.b16 %v916
        %v1204 = vunpack.c.l.b16 %v917
        %v1205 = vunpack.c.h.b16 %v917
        %v1206 = vpack.c.b16 %v1144, %v1142
        %v1207 = vpack.c.b16 %v1145, %v1143
        %v1208 = vpack.c.b16 %v1148, %v1146
        %v1209 = vpack.c.b16 %v1149, %v1147
        %v1210 = vpack.c.b16 %v1152, %v1150
        %v1211 = vpack.c.b16 %v1153, %v1151
        %v1212 = vpack.c.b16 %v1156, %v1154
        %v1213 = vpack.c.b16 %v1157, %v1155
        %v1214 = vpack.c.b16 %v1160, %v1158
        %v1215 = vpack.c.b16 %v1161, %v1159
        %v1216 = vpack.c.b16 %v1164, %v1162
        %v1217 = vpack.c.b16 %v1165, %v1163
        %v1218 = vpack.c.b16 %v1168, %v1166
        %v1219 = vpack.c.b16 %v1169, %v1167
        %v1220 = vpack.c.b16 %v1172, %v1170
        %v1221 = vpack.c.b16 %v1173, %v1171
        %v1222 = vpack.c.b16 %v1176, %v1174
        %v1223 = vpack.c.b16 %v1177, %v1175
        %v1224 = vpack.c.b16 %v1180, %v1178
        %v1225 = vpack.c.b16 %v1181, %v1179
        %v1226 = vpack.c.b16 %v1184, %v1182
        %v1227 = vpack.c.b16 %v1185, %v1183
        %v1228 = vpack.c.b16 %v1188, %v1186
        %v1229 = vpack.c.b16 %v1189, %v1187
        %v1230 = vpack.c.b16 %v1192, %v1190
        %v1231 = vpack.c.b16 %v1193, %v1191
        %v1232 = vpack.c.b16 %v1196, %v1194
        %v1233 = vpack.c.b16 %v1197, %v1195
        %v1234 = vpack.c.b16 %v1200, %v1198
        %v1235 = vpack.c.b16 %v1201, %v1199
        %v1236 = vpack.c.b16 %v1204, %v1202
        %v1237 = vpack.c.b16 %v1205, %v1203
        %v1302 = vunpack.c.l.b16 %v854
        %v1303 = vunpack.c.l.b16 %v855
        %v1304 = vunpack.c.l.b16 %v856
        %v1305 = vunpack.c.l.b16 %v857
        %v1306 = vunpack.c.l.b16 %v858
        %v1307 = vunpack.c.l.b16 %v859
        %v1308 = vunpack.c.l.b16 %v860
        %v1309 = vunpack.c.l.b16 %v861
        %v1310 = vunpack.c.l.b16 %v862
        %v1311 = vunpack.c.l.b16 %v863
        %v1312 = vunpack.c.l.b16 %v864
        %v1313 = vunpack.c.l.b16 %v865
        %v1314 = vunpack.c.l.b16 %v866
        %v1315 = vunpack.c.l.b16 %v867
        %v1316 = vunpack.c.l.b16 %v868
        %v1317 = vunpack.c.l.b16 %v869
        %v1318 = vunpack.c.l.b16 %v870
        %v1319 = vunpack.c.l.b16 %v871
        %v1320 = vunpack.c.l.b16 %v872
        %v1321 = vunpack.c.l.b16 %v873
        %v1322 = vunpack.c.l.b16 %v874
        %v1323 = vunpack.c.l.b16 %v875
        %v1324 = vunpack.c.l.b16 %v876
        %v1325 = vunpack.c.l.b16 %v877
        %v1326 = vunpack.c.l.b16 %v878
        %v1327 = vunpack.c.l.b16 %v879
        %v1328 = vunpack.c.l.b16 %v880
        %v1329 = vunpack.c.l.b16 %v881
        %v1330 = vunpack.c.l.b16 %v882
        %v1331 = vunpack.c.l.b16 %v883
        %v1332 = vunpack.c.l.b16 %v884
        %v1333 = vunpack.c.l.b16 %v885
        %v1334 = vpack.c.b16 %v1303, %v1302
        %v1335 = vpack.c.b16 %v1305, %v1304
        %v1336 = vpack.c.b16 %v1307, %v1306
        %v1337 = vpack.c.b16 %v1309, %v1308
        %v1338 = vpack.c.b16 %v1311, %v1310
        %v1339 = vpack.c.b16 %v1313, %v1312
        %v1340 = vpack.c.b16 %v1315, %v1314
        %v1341 = vpack.c.b16 %v1317, %v1316
        %v1342 = vpack.c.b16 %v1319, %v1318
        %v1343 = vpack.c.b16 %v1321, %v1320
        %v1344 = vpack.c.b16 %v1323, %v1322
        %v1345 = vpack.c.b16 %v1325, %v1324
        %v1346 = vpack.c.b16 %v1327, %v1326
        %v1347 = vpack.c.b16 %v1329, %v1328
        %v1348 = vpack.c.b16 %v1331, %v1330
        %v1349 = vpack.c.b16 %v1333, %v1332
        %1366 = vmatprep.subr.bf16.mxu0 0
        %1367 = vmatpush1.bf16.msra.mxu0 %v1334
        %1368 = vmatprep.subr.bf16.mxu0 0
        %1369 = vmatpush1.bf16.msra.mxu0 %v1335
        %1370 = vmatprep.subr.bf16.mxu0 0
        %1371 = vmatpush1.bf16.msra.mxu0 %v1336
        %1372 = vmatprep.subr.bf16.mxu0 0
        %1373 = vmatpush1.bf16.msra.mxu0 %v1337
        %1374 = vmatprep.subr.bf16.mxu0 0
        %1375 = vmatpush1.bf16.msra.mxu0 %v1338
        %1376 = vmatprep.subr.bf16.mxu0 0
        %1377 = vmatpush1.bf16.msra.mxu0 %v1339
        %1378 = vmatprep.subr.bf16.mxu0 0
        %1379 = vmatpush1.bf16.msra.mxu0 %v1340
        %1380 = vmatprep.subr.bf16.mxu0 0
        %1381 = vmatpush1.bf16.msra.mxu0 %v1341
        %1382 = vmatprep.subr.bf16.mxu0 0
        %1383 = vmatpush1.bf16.msra.mxu0 %v1342
        %1384 = vmatprep.subr.bf16.mxu0 0
        %1385 = vmatpush1.bf16.msra.mxu0 %v1343
        %1386 = vmatprep.subr.bf16.mxu0 0
        %1387 = vmatpush1.bf16.msra.mxu0 %v1344
        %1388 = vmatprep.subr.bf16.mxu0 0
        %1389 = vmatpush1.bf16.msra.mxu0 %v1345
        %1390 = vmatprep.subr.bf16.mxu0 0
        %1391 = vmatpush1.bf16.msra.mxu0 %v1346
        %1392 = vmatprep.subr.bf16.mxu0 0
        %1393 = vmatpush1.bf16.msra.mxu0 %v1347
        %1394 = vmatprep.subr.bf16.mxu0 0
        %1395 = vmatpush1.bf16.msra.mxu0 %v1348
        %1396 = vmatprep.subr.bf16.mxu0 0
        %1397 = vmatpush1.bf16.msra.mxu0 %v1349
        %1398 = vmatprep.mubr.bf16.mxu0 %v1207
        %1399 = vmatmul.mubr.bf16.gmra.mrb[0].mxu0 %v1206
        %v1400 = vpop.f32.mrb[0].mxu0
        %v1401 = vadd.f32 %v953, %v1400
        %v1402 = vpop.f32.mrb[0].mxu0
        %v1403 = vpop.f32.mrb[0].mxu0
        %v1404 = vadd.f32 %v958, %v1403
        %v1405 = vpop.f32.mrb[0].mxu0
        %1406 = vmatprep.mubr.bf16.mxu0 %v1209
        %1407 = vmatmul.mubr.bf16.gmra.mrb[0].mxu0 %v1208
        %v1408 = vpop.f32.mrb[0].mxu0
        %v1409 = vadd.f32 %v963, %v1408
        %v1410 = vpop.f32.mrb[0].mxu0
        %v1411 = vpop.f32.mrb[0].mxu0
        %v1412 = vadd.f32 %v968, %v1411
        %v1413 = vpop.f32.mrb[0].mxu0
        %1414 = vmatprep.mubr.bf16.mxu0 %v1211
        %1415 = vmatmul.mubr.bf16.gmra.mrb[0].mxu0 %v1210
        %v1416 = vpop.f32.mrb[0].mxu0
        %v1417 = vadd.f32 %v973, %v1416
        %v1418 = vpop.f32.mrb[0].mxu0
        %v1419 = vpop.f32.mrb[0].mxu0
        %v1420 = vadd.f32 %v978, %v1419
        %v1421 = vpop.f32.mrb[0].mxu0
        %1422 = vmatprep.mubr.bf16.mxu0 %v1213
        %1423 = vmatmul.mubr.bf16.gmra.mrb[0].mxu0 %v1212
        %v1424 = vpop.f32.mrb[0].mxu0
        %v1425 = vadd.f32 %v983, %v1424
        %v1426 = vpop.f32.mrb[0].mxu0
        %v1427 = vpop.f32.mrb[0].mxu0
        %v1428 = vadd.f32 %v988, %v1427
        %v1429 = vpop.f32.mrb[0].mxu0
        %1430 = vmatprep.mubr.bf16.mxu0 %v1215
        %1431 = vmatmul.mubr.bf16.gmra.mrb[0].mxu0 %v1214
        %v1432 = vpop.f32.mrb[0].mxu0
        %v1433 = vadd.f32 %v993, %v1432
        %v1434 = vpop.f32.mrb[0].mxu0
        %v1435 = vpop.f32.mrb[0].mxu0
        %v1436 = vadd.f32 %v998, %v1435
        %v1437 = vpop.f32.mrb[0].mxu0
        %1438 = vmatprep.mubr.bf16.mxu0 %v1217
        %1439 = vmatmul.mubr.bf16.gmra.mrb[0].mxu0 %v1216
        %v1440 = vpop.f32.mrb[0].mxu0
        %v1441 = vadd.f32 %v1003, %v1440
        %v1442 = vpop.f32.mrb[0].mxu0
        %v1443 = vpop.f32.mrb[0].mxu0
        %v1444 = vadd.f32 %v1008, %v1443
        %v1445 = vpop.f32.mrb[0].mxu0
        %1446 = vmatprep.mubr.bf16.mxu0 %v1219
        %1447 = vmatmul.mubr.bf16.gmra.mrb[0].mxu0 %v1218
        %v1448 = vpop.f32.mrb[0].mxu0
        %v1449 = vadd.f32 %v1013, %v1448
        %v1450 = vpop.f32.mrb[0].mxu0
        %v1451 = vpop.f32.mrb[0].mxu0
        %v1452 = vadd.f32 %v1018, %v1451
        %v1453 = vpop.f32.mrb[0].mxu0
        %1454 = vmatprep.mubr.bf16.mxu0 %v1221
        %1455 = vmatmul.mubr.bf16.gmra.mrb[0].mxu0 %v1220
        %v1456 = vpop.f32.mrb[0].mxu0
        %v1457 = vadd.f32 %v1023, %v1456
        %v1458 = vpop.f32.mrb[0].mxu0
        %v1459 = vpop.f32.mrb[0].mxu0
        %v1460 = vadd.f32 %v1028, %v1459
        %v1461 = vpop.f32.mrb[0].mxu0
        %1462 = vmatprep.mubr.bf16.mxu0 %v1223
        %1463 = vmatmul.mubr.bf16.gmra.mrb[0].mxu0 %v1222
        %v1464 = vpop.f32.mrb[0].mxu0
        %v1465 = vadd.f32 %v1033, %v1464
        %v1466 = vpop.f32.mrb[0].mxu0
        %v1467 = vpop.f32.mrb[0].mxu0
        %v1468 = vadd.f32 %v1038, %v1467
        %v1469 = vpop.f32.mrb[0].mxu0
        %1470 = vmatprep.mubr.bf16.mxu0 %v1225
        %1471 = vmatmul.mubr.bf16.gmra.mrb[0].mxu0 %v1224
        %v1472 = vpop.f32.mrb[0].mxu0
        %v1473 = vadd.f32 %v1043, %v1472
        %v1474 = vpop.f32.mrb[0].mxu0
        %v1475 = vpop.f32.mrb[0].mxu0
        %v1476 = vadd.f32 %v1048, %v1475
        %v1477 = vpop.f32.mrb[0].mxu0
        %1478 = vmatprep.mubr.bf16.mxu0 %v1227
        %1479 = vmatmul.mubr.bf16.gmra.mrb[0].mxu0 %v1226
        %v1480 = vpop.f32.mrb[0].mxu0
        %v1481 = vadd.f32 %v1053, %v1480
        %v1482 = vpop.f32.mrb[0].mxu0
        %v1483 = vpop.f32.mrb[0].mxu0
        %v1484 = vadd.f32 %v1058, %v1483
        %v1485 = vpop.f32.mrb[0].mxu0
        %1486 = vmatprep.mubr.bf16.mxu0 %v1229
        %1487 = vmatmul.mubr.bf16.gmra.mrb[0].mxu0 %v1228
        %v1488 = vpop.f32.mrb[0].mxu0
        %v1489 = vadd.f32 %v1063, %v1488
        %v1490 = vpop.f32.mrb[0].mxu0
        %v1491 = vpop.f32.mrb[0].mxu0
        %v1492 = vadd.f32 %v1068, %v1491
        %v1493 = vpop.f32.mrb[0].mxu0
        %1494 = vmatprep.mubr.bf16.mxu0 %v1231
        %1495 = vmatmul.mubr.bf16.gmra.mrb[0].mxu0 %v1230
        %v1496 = vpop.f32.mrb[0].mxu0
        %v1497 = vadd.f32 %v1073, %v1496
        %v1498 = vpop.f32.mrb[0].mxu0
        %v1499 = vpop.f32.mrb[0].mxu0
        %v1500 = vadd.f32 %v1078, %v1499
        %v1501 = vpop.f32.mrb[0].mxu0
        %1502 = vmatprep.mubr.bf16.mxu0 %v1233
        %1503 = vmatmul.mubr.bf16.gmra.mrb[0].mxu0 %v1232
        %v1504 = vpop.f32.mrb[0].mxu0
        %v1505 = vadd.f32 %v1083, %v1504
        %v1506 = vpop.f32.mrb[0].mxu0
        %v1507 = vpop.f32.mrb[0].mxu0
        %v1508 = vadd.f32 %v1088, %v1507
        %v1509 = vpop.f32.mrb[0].mxu0
        %1510 = vmatprep.mubr.bf16.mxu0 %v1235
        %1511 = vmatmul.mubr.bf16.gmra.mrb[0].mxu0 %v1234
        %v1512 = vpop.f32.mrb[0].mxu0
        %v1513 = vadd.f32 %v1093, %v1512
        %v1514 = vpop.f32.mrb[0].mxu0
        %v1515 = vpop.f32.mrb[0].mxu0
        %v1516 = vadd.f32 %v1098, %v1515
        %v1517 = vpop.f32.mrb[0].mxu0
        %1518 = vmatprep.mubr.bf16.mxu0 %v1237
        %1519 = vmatmul.mubr.bf16.gmra.mrb[0].mxu0 %v1236
        %v1520 = vpop.f32.mrb[0].mxu0
        %v1521 = vadd.f32 %v1103, %v1520
        %v1522 = vpop.f32.mrb[0].mxu0
        %v1523 = vpop.f32.mrb[0].mxu0
        %v1524 = vadd.f32 %v1108, %v1523
        %v1525 = vpop.f32.mrb[0].mxu0
        %1526 = vdwg.mxu0
        %v1527 = vmax.f32 %v1401, 0.0
        %v1528 = vmax.f32 %v1404, 0.0
        %v1529 = vmax.f32 %v1409, 0.0
        %v1530 = vmax.f32 %v1412, 0.0
        %v1531 = vmax.f32 %v1417, 0.0
        %v1532 = vmax.f32 %v1420, 0.0
        %v1533 = vmax.f32 %v1425, 0.0
        %v1534 = vmax.f32 %v1428, 0.0
        %v1535 = vmax.f32 %v1433, 0.0
        %v1536 = vmax.f32 %v1436, 0.0
        %v1537 = vmax.f32 %v1441, 0.0
        %v1538 = vmax.f32 %v1444, 0.0
        %v1539 = vmax.f32 %v1449, 0.0
        %v1540 = vmax.f32 %v1452, 0.0
        %v1541 = vmax.f32 %v1457, 0.0
        %v1542 = vmax.f32 %v1460, 0.0
        %v1543 = vmax.f32 %v1465, 0.0
        %v1544 = vmax.f32 %v1468, 0.0
        %v1545 = vmax.f32 %v1473, 0.0
        %v1546 = vmax.f32 %v1476, 0.0
        %v1547 = vmax.f32 %v1481, 0.0
        %v1548 = vmax.f32 %v1484, 0.0
        %v1549 = vmax.f32 %v1489, 0.0
        %v1550 = vmax.f32 %v1492, 0.0
        %v1551 = vmax.f32 %v1497, 0.0
        %v1552 = vmax.f32 %v1500, 0.0
        %v1553 = vmax.f32 %v1505, 0.0
        %v1554 = vmax.f32 %v1508, 0.0
        %v1555 = vmax.f32 %v1513, 0.0
        %v1556 = vmax.f32 %v1516, 0.0
        %v1557 = vmax.f32 %v1521, 0.0
        %v1558 = vmax.f32 %v1524, 0.0
        %v1559 = vpack.c.bf16 %v1528, %v1527
        %v1560 = vpack.c.bf16 %v1530, %v1529
        %v1561 = vpack.c.bf16 %v1532, %v1531
        %v1562 = vpack.c.bf16 %v1534, %v1533
        %v1563 = vpack.c.bf16 %v1536, %v1535
        %v1564 = vpack.c.bf16 %v1538, %v1537
        %v1565 = vpack.c.bf16 %v1540, %v1539
        %v1566 = vpack.c.bf16 %v1542, %v1541
        %v1567 = vpack.c.bf16 %v1544, %v1543
        %v1568 = vpack.c.bf16 %v1546, %v1545
        %v1569 = vpack.c.bf16 %v1548, %v1547
        %v1570 = vpack.c.bf16 %v1550, %v1549
        %v1571 = vpack.c.bf16 %v1552, %v1551
        %v1572 = vpack.c.bf16 %v1554, %v1553
        %v1573 = vpack.c.bf16 %v1556, %v1555
        %v1574 = vpack.c.bf16 %v1558, %v1557
        %v1575 = vld [vmem:[#allocation12] sm:$0xff]
        %v1576 = vld [vmem:[#allocation12 + $0x8] sm:$0xff]
        %v1577 = vld [vmem:[#allocation12 + $0x10] sm:$0xff]
        %v1578 = vld [vmem:[#allocation12 + $0x18] sm:$0xff]
        %v1579 = vld [vmem:[#allocation12 + $0x20] sm:$0xff]
        %v1580 = vld [vmem:[#allocation12 + $0x28] sm:$0xff]
        %v1581 = vld [vmem:[#allocation12 + $0x30] sm:$0xff]
        %v1582 = vld [vmem:[#allocation12 + $0x38] sm:$0xff]
        %v1583 = vld [vmem:[#allocation12 + $0x40] sm:$0xff]
        %v1584 = vld [vmem:[#allocation12 + $0x48] sm:$0xff]
        %v1585 = vld [vmem:[#allocation12 + $0x50] sm:$0xff]
        %v1586 = vld [vmem:[#allocation12 + $0x58] sm:$0xff]
        %v1587 = vld [vmem:[#allocation12 + $0x60] sm:$0xff]
        %v1588 = vld [vmem:[#allocation12 + $0x68] sm:$0xff]
        %v1589 = vld [vmem:[#allocation12 + $0x70] sm:$0xff]
        %v1590 = vld [vmem:[#allocation12 + $0x78] sm:$0xff]
        %v1591 = vld [vmem:[#allocation12 + $0x80] sm:$0xff]
        %v1592 = vld [vmem:[#allocation12 + $0x88] sm:$0xff]
        %v1593 = vld [vmem:[#allocation12 + $0x90] sm:$0xff]
        %v1594 = vld [vmem:[#allocation12 + $0x98] sm:$0xff]
        %v1595 = vld [vmem:[#allocation12 + $0xa0] sm:$0xff]
        %v1596 = vld [vmem:[#allocation12 + $0xa8] sm:$0xff]
        %v1597 = vld [vmem:[#allocation12 + $0xb0] sm:$0xff]
        %v1598 = vld [vmem:[#allocation12 + $0xb8] sm:$0xff]
        %v1599 = vld [vmem:[#allocation12 + $0xc0] sm:$0xff]
        %v1600 = vld [vmem:[#allocation12 + $0xc8] sm:$0xff]
        %v1601 = vld [vmem:[#allocation12 + $0xd0] sm:$0xff]
        %v1602 = vld [vmem:[#allocation12 + $0xd8] sm:$0xff]
        %v1603 = vld [vmem:[#allocation12 + $0xe0] sm:$0xff]
        %v1604 = vld [vmem:[#allocation12 + $0xe8] sm:$0xff]
        %v1605 = vld [vmem:[#allocation12 + $0xf0] sm:$0xff]
        %v1606 = vld [vmem:[#allocation12 + $0xf8] sm:$0xff]
        %v1607 = vld [vmem:[%s10] sm:$0xff]
        %v1608 = vld [vmem:[%s10 + $0x8] sm:$0xff]
        %v1609 = vld [vmem:[%s10 + $0x10] sm:$0xff]
        %v1610 = vld [vmem:[%s10 + $0x18] sm:$0xff]
        %v1611 = vld [vmem:[%s10 + $0x20] sm:$0xff]
        %v1612 = vld [vmem:[%s10 + $0x28] sm:$0xff]
        %v1613 = vld [vmem:[%s10 + $0x30] sm:$0xff]
        %v1614 = vld [vmem:[%s10 + $0x38] sm:$0xff]
        %v1615 = vld [vmem:[%s10 + $0x40] sm:$0xff]
        %v1616 = vld [vmem:[%s10 + $0x48] sm:$0xff]
        %v1617 = vld [vmem:[%s10 + $0x50] sm:$0xff]
        %v1618 = vld [vmem:[%s10 + $0x58] sm:$0xff]
        %v1619 = vld [vmem:[%s10 + $0x60] sm:$0xff]
        %v1620 = vld [vmem:[%s10 + $0x68] sm:$0xff]
        %v1621 = vld [vmem:[%s10 + $0x70] sm:$0xff]
        %v1622 = vld [vmem:[%s10 + $0x78] sm:$0xff]
        %v1623 = vld [vmem:[%s10 + $0x80] sm:$0xff]
        %v1624 = vld [vmem:[%s10 + $0x88] sm:$0xff]
        %v1625 = vld [vmem:[%s10 + $0x90] sm:$0xff]
        %v1626 = vld [vmem:[%s10 + $0x98] sm:$0xff]
        %v1627 = vld [vmem:[%s10 + $0xa0] sm:$0xff]
        %v1628 = vld [vmem:[%s10 + $0xa8] sm:$0xff]
        %v1629 = vld [vmem:[%s10 + $0xb0] sm:$0xff]
        %v1630 = vld [vmem:[%s10 + $0xb8] sm:$0xff]
        %v1631 = vld [vmem:[%s10 + $0xc0] sm:$0xff]
        %v1632 = vld [vmem:[%s10 + $0xc8] sm:$0xff]
        %v1633 = vld [vmem:[%s10 + $0xd0] sm:$0xff]
        %v1634 = vld [vmem:[%s10 + $0xd8] sm:$0xff]
        %v1635 = vld [vmem:[%s10 + $0xe0] sm:$0xff]
        %v1636 = vld [vmem:[%s10 + $0xe8] sm:$0xff]
        %v1637 = vld [vmem:[%s10 + $0xf0] sm:$0xff]
        %v1638 = vld [vmem:[%s10 + $0xf8] sm:$0xff]
        %1640 = vset.pattern.permute.xlu0 0
        %1641 = vperm.xlu0 %1640, %v1607
        %v1642 = vpop.permute.xlu0 %1641
        %1645 = vset.pattern.permute.xlu0 0
        %1646 = vperm.xlu0 %1645, %v1608
        %v1647 = vpop.permute.xlu0 %1646
        %1650 = vset.pattern.permute.xlu0 0
        %1651 = vperm.xlu0 %1650, %v1609
        %v1652 = vpop.permute.xlu0 %1651
        %1655 = vset.pattern.permute.xlu0 0
        %1656 = vperm.xlu0 %1655, %v1610
        %v1657 = vpop.permute.xlu0 %1656
        %1660 = vset.pattern.permute.xlu0 0
        %1661 = vperm.xlu0 %1660, %v1611
        %v1662 = vpop.permute.xlu0 %1661
        %1665 = vset.pattern.permute.xlu0 0
        %1666 = vperm.xlu0 %1665, %v1612
        %v1667 = vpop.permute.xlu0 %1666
        %1670 = vset.pattern.permute.xlu0 0
        %1671 = vperm.xlu0 %1670, %v1613
        %v1672 = vpop.permute.xlu0 %1671
        %1675 = vset.pattern.permute.xlu0 0
        %1676 = vperm.xlu0 %1675, %v1614
        %v1677 = vpop.permute.xlu0 %1676
        %1680 = vset.pattern.permute.xlu0 0
        %1681 = vperm.xlu0 %1680, %v1615
        %v1682 = vpop.permute.xlu0 %1681
        %1685 = vset.pattern.permute.xlu0 0
        %1686 = vperm.xlu0 %1685, %v1616
        %v1687 = vpop.permute.xlu0 %1686
        %1690 = vset.pattern.permute.xlu0 0
        %1691 = vperm.xlu0 %1690, %v1617
        %v1692 = vpop.permute.xlu0 %1691
        %1695 = vset.pattern.permute.xlu0 0
        %1696 = vperm.xlu0 %1695, %v1618
        %v1697 = vpop.permute.xlu0 %1696
        %1700 = vset.pattern.permute.xlu0 0
        %1701 = vperm.xlu0 %1700, %v1619
        %v1702 = vpop.permute.xlu0 %1701
        %1705 = vset.pattern.permute.xlu0 0
        %1706 = vperm.xlu0 %1705, %v1620
        %v1707 = vpop.permute.xlu0 %1706
        %1710 = vset.pattern.permute.xlu0 0
        %1711 = vperm.xlu0 %1710, %v1621
        %v1712 = vpop.permute.xlu0 %1711
        %1715 = vset.pattern.permute.xlu0 0
        %1716 = vperm.xlu0 %1715, %v1622
        %v1717 = vpop.permute.xlu0 %1716
        %1720 = vset.pattern.permute.xlu0 0
        %1721 = vperm.xlu0 %1720, %v1623
        %v1722 = vpop.permute.xlu0 %1721
        %1725 = vset.pattern.permute.xlu0 0
        %1726 = vperm.xlu0 %1725, %v1624
        %v1727 = vpop.permute.xlu0 %1726
        %1730 = vset.pattern.permute.xlu0 0
        %1731 = vperm.xlu0 %1730, %v1625
        %v1732 = vpop.permute.xlu0 %1731
        %1735 = vset.pattern.permute.xlu0 0
        %1736 = vperm.xlu0 %1735, %v1626
        %v1737 = vpop.permute.xlu0 %1736
        %1740 = vset.pattern.permute.xlu0 0
        %1741 = vperm.xlu0 %1740, %v1627
        %v1742 = vpop.permute.xlu0 %1741
        %1745 = vset.pattern.permute.xlu0 0
        %1746 = vperm.xlu0 %1745, %v1628
        %v1747 = vpop.permute.xlu0 %1746
        %1750 = vset.pattern.permute.xlu0 0
        %1751 = vperm.xlu0 %1750, %v1629
        %v1752 = vpop.permute.xlu0 %1751
        %1755 = vset.pattern.permute.xlu0 0
        %1756 = vperm.xlu0 %1755, %v1630
        %v1757 = vpop.permute.xlu0 %1756
        %1760 = vset.pattern.permute.xlu0 0
        %1761 = vperm.xlu0 %1760, %v1631
        %v1762 = vpop.permute.xlu0 %1761
        %1765 = vset.pattern.permute.xlu0 0
        %1766 = vperm.xlu0 %1765, %v1632
        %v1767 = vpop.permute.xlu0 %1766
        %1770 = vset.pattern.permute.xlu0 0
        %1771 = vperm.xlu0 %1770, %v1633
        %v1772 = vpop.permute.xlu0 %1771
        %1775 = vset.pattern.permute.xlu0 0
        %1776 = vperm.xlu0 %1775, %v1634
        %v1777 = vpop.permute.xlu0 %1776
        %1780 = vset.pattern.permute.xlu0 0
        %1781 = vperm.xlu0 %1780, %v1635
        %v1782 = vpop.permute.xlu0 %1781
        %1785 = vset.pattern.permute.xlu0 0
        %1786 = vperm.xlu0 %1785, %v1636
        %v1787 = vpop.permute.xlu0 %1786
        %1790 = vset.pattern.permute.xlu0 0
        %1791 = vperm.xlu0 %1790, %v1637
        %v1792 = vpop.permute.xlu0 %1791
        %1795 = vset.pattern.permute.xlu0 0
        %1796 = vperm.xlu0 %1795, %v1638
        %v1797 = vpop.permute.xlu0 %1796
        %v1831 = vunpack.c.l.b16 %v1575
        %v1832 = vunpack.c.h.b16 %v1575
        %v1833 = vunpack.c.l.b16 %v1576
        %v1834 = vunpack.c.h.b16 %v1576
        %v1835 = vunpack.c.l.b16 %v1577
        %v1836 = vunpack.c.h.b16 %v1577
        %v1837 = vunpack.c.l.b16 %v1578
        %v1838 = vunpack.c.h.b16 %v1578
        %v1839 = vunpack.c.l.b16 %v1579
        %v1840 = vunpack.c.h.b16 %v1579
        %v1841 = vunpack.c.l.b16 %v1580
        %v1842 = vunpack.c.h.b16 %v1580
        %v1843 = vunpack.c.l.b16 %v1581
        %v1844 = vunpack.c.h.b16 %v1581
        %v1845 = vunpack.c.l.b16 %v1582
        %v1846 = vunpack.c.h.b16 %v1582
        %v1847 = vunpack.c.l.b16 %v1583
        %v1848 = vunpack.c.h.b16 %v1583
        %v1849 = vunpack.c.l.b16 %v1584
        %v1850 = vunpack.c.h.b16 %v1584
        %v1851 = vunpack.c.l.b16 %v1585
        %v1852 = vunpack.c.h.b16 %v1585
        %v1853 = vunpack.c.l.b16 %v1586
        %v1854 = vunpack.c.h.b16 %v1586
        %v1855 = vunpack.c.l.b16 %v1587
        %v1856 = vunpack.c.h.b16 %v1587
        %v1857 = vunpack.c.l.b16 %v1588
        %v1858 = vunpack.c.h.b16 %v1588
        %v1859 = vunpack.c.l.b16 %v1589
        %v1860 = vunpack.c.h.b16 %v1589
        %v1861 = vunpack.c.l.b16 %v1590
        %v1862 = vunpack.c.h.b16 %v1590
        %v1863 = vunpack.c.l.b16 %v1591
        %v1864 = vunpack.c.h.b16 %v1591
        %v1865 = vunpack.c.l.b16 %v1592
        %v1866 = vunpack.c.h.b16 %v1592
        %v1867 = vunpack.c.l.b16 %v1593
        %v1868 = vunpack.c.h.b16 %v1593
        %v1869 = vunpack.c.l.b16 %v1594
        %v1870 = vunpack.c.h.b16 %v1594
        %v1871 = vunpack.c.l.b16 %v1595
        %v1872 = vunpack.c.h.b16 %v1595
        %v1873 = vunpack.c.l.b16 %v1596
        %v1874 = vunpack.c.h.b16 %v1596
        %v1875 = vunpack.c.l.b16 %v1597
        %v1876 = vunpack.c.h.b16 %v1597
        %v1877 = vunpack.c.l.b16 %v1598
        %v1878 = vunpack.c.h.b16 %v1598
        %v1879 = vunpack.c.l.b16 %v1599
        %v1880 = vunpack.c.h.b16 %v1599
        %v1881 = vunpack.c.l.b16 %v1600
        %v1882 = vunpack.c.h.b16 %v1600
        %v1883 = vunpack.c.l.b16 %v1601
        %v1884 = vunpack.c.h.b16 %v1601
        %v1885 = vunpack.c.l.b16 %v1602
        %v1886 = vunpack.c.h.b16 %v1602
        %v1887 = vunpack.c.l.b16 %v1603
        %v1888 = vunpack.c.h.b16 %v1603
        %v1889 = vunpack.c.l.b16 %v1604
        %v1890 = vunpack.c.h.b16 %v1604
        %v1891 = vunpack.c.l.b16 %v1605
        %v1892 = vunpack.c.h.b16 %v1605
        %v1893 = vunpack.c.l.b16 %v1606
        %v1894 = vunpack.c.h.b16 %v1606
        %v1895 = vpack.c.b16 %v1833, %v1831
        %v1896 = vpack.c.b16 %v1834, %v1832
        %v1897 = vpack.c.b16 %v1837, %v1835
        %v1898 = vpack.c.b16 %v1838, %v1836
        %v1899 = vpack.c.b16 %v1841, %v1839
        %v1900 = vpack.c.b16 %v1842, %v1840
        %v1901 = vpack.c.b16 %v1845, %v1843
        %v1902 = vpack.c.b16 %v1846, %v1844
        %v1903 = vpack.c.b16 %v1849, %v1847
        %v1904 = vpack.c.b16 %v1850, %v1848
        %v1905 = vpack.c.b16 %v1853, %v1851
        %v1906 = vpack.c.b16 %v1854, %v1852
        %v1907 = vpack.c.b16 %v1857, %v1855
        %v1908 = vpack.c.b16 %v1858, %v1856
        %v1909 = vpack.c.b16 %v1861, %v1859
        %v1910 = vpack.c.b16 %v1862, %v1860
        %v1911 = vpack.c.b16 %v1865, %v1863
        %v1912 = vpack.c.b16 %v1866, %v1864
        %v1913 = vpack.c.b16 %v1869, %v1867
        %v1914 = vpack.c.b16 %v1870, %v1868
        %v1915 = vpack.c.b16 %v1873, %v1871
        %v1916 = vpack.c.b16 %v1874, %v1872
        %v1917 = vpack.c.b16 %v1877, %v1875
        %v1918 = vpack.c.b16 %v1878, %v1876
        %v1919 = vpack.c.b16 %v1881, %v1879
        %v1920 = vpack.c.b16 %v1882, %v1880
        %v1921 = vpack.c.b16 %v1885, %v1883
        %v1922 = vpack.c.b16 %v1886, %v1884
        %v1923 = vpack.c.b16 %v1889, %v1887
        %v1924 = vpack.c.b16 %v1890, %v1888
        %v1925 = vpack.c.b16 %v1893, %v1891
        %v1926 = vpack.c.b16 %v1894, %v1892
        %1959 = vmatprep.subr.bf16.mxu0 0
        %1960 = vmatpush1.bf16.msra.mxu0 %v1559
        %1961 = vmatprep.subr.bf16.mxu0 0
        %1962 = vmatpush1.bf16.msra.mxu0 %v1560
        %1963 = vmatprep.subr.bf16.mxu0 0
        %1964 = vmatpush1.bf16.msra.mxu0 %v1561
        %1965 = vmatprep.subr.bf16.mxu0 0
        %1966 = vmatpush1.bf16.msra.mxu0 %v1562
        %1967 = vmatprep.subr.bf16.mxu0 0
        %1968 = vmatpush1.bf16.msra.mxu0 %v1563
        %1969 = vmatprep.subr.bf16.mxu0 0
        %1970 = vmatpush1.bf16.msra.mxu0 %v1564
        %1971 = vmatprep.subr.bf16.mxu0 0
        %1972 = vmatpush1.bf16.msra.mxu0 %v1565
        %1973 = vmatprep.subr.bf16.mxu0 0
        %1974 = vmatpush1.bf16.msra.mxu0 %v1566
        %1975 = vmatprep.subr.bf16.mxu0 0
        %1976 = vmatpush1.bf16.msra.mxu0 %v1567
        %1977 = vmatprep.subr.bf16.mxu0 0
        %1978 = vmatpush1.bf16.msra.mxu0 %v1568
        %1979 = vmatprep.subr.bf16.mxu0 0
        %1980 = vmatpush1.bf16.msra.mxu0 %v1569
        %1981 = vmatprep.subr.bf16.mxu0 0
        %1982 = vmatpush1.bf16.msra.mxu0 %v1570
        %1983 = vmatprep.subr.bf16.mxu0 0
        %1984 = vmatpush1.bf16.msra.mxu0 %v1571
        %1985 = vmatprep.subr.bf16.mxu0 0
        %1986 = vmatpush1.bf16.msra.mxu0 %v1572
        %1987 = vmatprep.subr.bf16.mxu0 0
        %1988 = vmatpush1.bf16.msra.mxu0 %v1573
        %1989 = vmatprep.subr.bf16.mxu0 0
        %1990 = vmatpush1.bf16.msra.mxu0 %v1574
        %1991 = vmatprep.mubr.bf16.mxu0 %v1896
        %1992 = vmatmul.mubr.bf16.gmra.mrb[0].mxu0 %v1895
        %v1993 = vpop.f32.mrb[0].mxu0
        %v1994 = vadd.f32 %v1642, %v1993
        %v1995 = vpop.f32.mrb[0].mxu0
        %v1996 = vpop.f32.mrb[0].mxu0
        %v1997 = vadd.f32 %v1647, %v1996
        %v1998 = vpop.f32.mrb[0].mxu0
        %1999 = vmatprep.mubr.bf16.mxu0 %v1898
        %2000 = vmatmul.mubr.bf16.gmra.mrb[0].mxu0 %v1897
        %v2001 = vpop.f32.mrb[0].mxu0
        %v2002 = vadd.f32 %v1652, %v2001
        %v2003 = vpop.f32.mrb[0].mxu0
        %v2004 = vpop.f32.mrb[0].mxu0
        %v2005 = vadd.f32 %v1657, %v2004
        %v2006 = vpop.f32.mrb[0].mxu0
        %2007 = vmatprep.mubr.bf16.mxu0 %v1900
        %2008 = vmatmul.mubr.bf16.gmra.mrb[0].mxu0 %v1899
        %v2009 = vpop.f32.mrb[0].mxu0
        %v2010 = vadd.f32 %v1662, %v2009
        %v2011 = vpop.f32.mrb[0].mxu0
        %v2012 = vpop.f32.mrb[0].mxu0
        %v2013 = vadd.f32 %v1667, %v2012
        %v2014 = vpop.f32.mrb[0].mxu0
        %2015 = vmatprep.mubr.bf16.mxu0 %v1902
        %2016 = vmatmul.mubr.bf16.gmra.mrb[0].mxu0 %v1901
        %v2017 = vpop.f32.mrb[0].mxu0
        %v2018 = vadd.f32 %v1672, %v2017
        %v2019 = vpop.f32.mrb[0].mxu0
        %v2020 = vpop.f32.mrb[0].mxu0
        %v2021 = vadd.f32 %v1677, %v2020
        %v2022 = vpop.f32.mrb[0].mxu0
        %2023 = vmatprep.mubr.bf16.mxu0 %v1904
        %2024 = vmatmul.mubr.bf16.gmra.mrb[0].mxu0 %v1903
        %v2025 = vpop.f32.mrb[0].mxu0
        %v2026 = vadd.f32 %v1682, %v2025
        %v2027 = vpop.f32.mrb[0].mxu0
        %v2028 = vpop.f32.mrb[0].mxu0
        %v2029 = vadd.f32 %v1687, %v2028
        %v2030 = vpop.f32.mrb[0].mxu0
        %2031 = vmatprep.mubr.bf16.mxu0 %v1906
        %2032 = vmatmul.mubr.bf16.gmra.mrb[0].mxu0 %v1905
        %v2033 = vpop.f32.mrb[0].mxu0
        %v2034 = vadd.f32 %v1692, %v2033
        %v2035 = vpop.f32.mrb[0].mxu0
        %v2036 = vpop.f32.mrb[0].mxu0
        %v2037 = vadd.f32 %v1697, %v2036
        %v2038 = vpop.f32.mrb[0].mxu0
        %2039 = vmatprep.mubr.bf16.mxu0 %v1908
        %2040 = vmatmul.mubr.bf16.gmra.mrb[0].mxu0 %v1907
        %v2041 = vpop.f32.mrb[0].mxu0
        %v2042 = vadd.f32 %v1702, %v2041
        %v2043 = vpop.f32.mrb[0].mxu0
        %v2044 = vpop.f32.mrb[0].mxu0
        %v2045 = vadd.f32 %v1707, %v2044
        %v2046 = vpop.f32.mrb[0].mxu0
        %2047 = vmatprep.mubr.bf16.mxu0 %v1910
        %2048 = vmatmul.mubr.bf16.gmra.mrb[0].mxu0 %v1909
        %v2049 = vpop.f32.mrb[0].mxu0
        %v2050 = vadd.f32 %v1712, %v2049
        %v2051 = vpop.f32.mrb[0].mxu0
        %v2052 = vpop.f32.mrb[0].mxu0
        %v2053 = vadd.f32 %v1717, %v2052
        %v2054 = vpop.f32.mrb[0].mxu0
        %2055 = vmatprep.mubr.bf16.mxu0 %v1912
        %2056 = vmatmul.mubr.bf16.gmra.mrb[0].mxu0 %v1911
        %v2057 = vpop.f32.mrb[0].mxu0
        %v2058 = vadd.f32 %v1722, %v2057
        %v2059 = vpop.f32.mrb[0].mxu0
        %v2060 = vpop.f32.mrb[0].mxu0
        %v2061 = vadd.f32 %v1727, %v2060
        %v2062 = vpop.f32.mrb[0].mxu0
        %2063 = vmatprep.mubr.bf16.mxu0 %v1914
        %2064 = vmatmul.mubr.bf16.gmra.mrb[0].mxu0 %v1913
        %v2065 = vpop.f32.mrb[0].mxu0
        %v2066 = vadd.f32 %v1732, %v2065
        %v2067 = vpop.f32.mrb[0].mxu0
        %v2068 = vpop.f32.mrb[0].mxu0
        %v2069 = vadd.f32 %v1737, %v2068
        %v2070 = vpop.f32.mrb[0].mxu0
        %2071 = vmatprep.mubr.bf16.mxu0 %v1916
        %2072 = vmatmul.mubr.bf16.gmra.mrb[0].mxu0 %v1915
        %v2073 = vpop.f32.mrb[0].mxu0
        %v2074 = vadd.f32 %v1742, %v2073
        %v2075 = vpop.f32.mrb[0].mxu0
        %v2076 = vpop.f32.mrb[0].mxu0
        %v2077 = vadd.f32 %v1747, %v2076
        %v2078 = vpop.f32.mrb[0].mxu0
        %2079 = vmatprep.mubr.bf16.mxu0 %v1918
        %2080 = vmatmul.mubr.bf16.gmra.mrb[0].mxu0 %v1917
        %v2081 = vpop.f32.mrb[0].mxu0
        %v2082 = vadd.f32 %v1752, %v2081
        %v2083 = vpop.f32.mrb[0].mxu0
        %v2084 = vpop.f32.mrb[0].mxu0
        %v2085 = vadd.f32 %v1757, %v2084
        %v2086 = vpop.f32.mrb[0].mxu0
        %2087 = vmatprep.mubr.bf16.mxu0 %v1920
        %2088 = vmatmul.mubr.bf16.gmra.mrb[0].mxu0 %v1919
        %v2089 = vpop.f32.mrb[0].mxu0
        %v2090 = vadd.f32 %v1762, %v2089
        %v2091 = vpop.f32.mrb[0].mxu0
        %v2092 = vpop.f32.mrb[0].mxu0
        %v2093 = vadd.f32 %v1767, %v2092
        %v2094 = vpop.f32.mrb[0].mxu0
        %2095 = vmatprep.mubr.bf16.mxu0 %v1922
        %2096 = vmatmul.mubr.bf16.gmra.mrb[0].mxu0 %v1921
        %v2097 = vpop.f32.mrb[0].mxu0
        %v2098 = vadd.f32 %v1772, %v2097
        %v2099 = vpop.f32.mrb[0].mxu0
        %v2100 = vpop.f32.mrb[0].mxu0
        %v2101 = vadd.f32 %v1777, %v2100
        %v2102 = vpop.f32.mrb[0].mxu0
        %2103 = vmatprep.mubr.bf16.mxu0 %v1924
        %2104 = vmatmul.mubr.bf16.gmra.mrb[0].mxu0 %v1923
        %v2105 = vpop.f32.mrb[0].mxu0
        %v2106 = vadd.f32 %v1782, %v2105
        %v2107 = vpop.f32.mrb[0].mxu0
        %v2108 = vpop.f32.mrb[0].mxu0
        %v2109 = vadd.f32 %v1787, %v2108
        %v2110 = vpop.f32.mrb[0].mxu0
        %2111 = vmatprep.mubr.bf16.mxu0 %v1926
        %2112 = vmatmul.mubr.bf16.gmra.mrb[0].mxu0 %v1925
        %v2113 = vpop.f32.mrb[0].mxu0
        %v2114 = vadd.f32 %v1792, %v2113
        %v2115 = vpop.f32.mrb[0].mxu0
        %v2116 = vpop.f32.mrb[0].mxu0
        %v2117 = vadd.f32 %v1797, %v2116
        %v2118 = vpop.f32.mrb[0].mxu0
        %2119 = vdwg.mxu0
        %v2120 = vmax.f32 %v1994, 0.0
        %v2121 = vmax.f32 %v1997, 0.0
        %v2122 = vmax.f32 %v2002, 0.0
        %v2123 = vmax.f32 %v2005, 0.0
        %v2124 = vmax.f32 %v2010, 0.0
        %v2125 = vmax.f32 %v2013, 0.0
        %v2126 = vmax.f32 %v2018, 0.0
        %v2127 = vmax.f32 %v2021, 0.0
        %v2128 = vmax.f32 %v2026, 0.0
        %v2129 = vmax.f32 %v2029, 0.0
        %v2130 = vmax.f32 %v2034, 0.0
        %v2131 = vmax.f32 %v2037, 0.0
        %v2132 = vmax.f32 %v2042, 0.0
        %v2133 = vmax.f32 %v2045, 0.0
        %v2134 = vmax.f32 %v2050, 0.0
        %v2135 = vmax.f32 %v2053, 0.0
        %v2136 = vmax.f32 %v2058, 0.0
        %v2137 = vmax.f32 %v2061, 0.0
        %v2138 = vmax.f32 %v2066, 0.0
        %v2139 = vmax.f32 %v2069, 0.0
        %v2140 = vmax.f32 %v2074, 0.0
        %v2141 = vmax.f32 %v2077, 0.0
        %v2142 = vmax.f32 %v2082, 0.0
        %v2143 = vmax.f32 %v2085, 0.0
        %v2144 = vmax.f32 %v2090, 0.0
        %v2145 = vmax.f32 %v2093, 0.0
        %v2146 = vmax.f32 %v2098, 0.0
        %v2147 = vmax.f32 %v2101, 0.0
        %v2148 = vmax.f32 %v2106, 0.0
        %v2149 = vmax.f32 %v2109, 0.0
        %v2150 = vmax.f32 %v2114, 0.0
        %v2151 = vmax.f32 %v2117, 0.0
        %v2152 = vld [vmem:[#allocation2] sm:$0xff]
        %v2153 = vld [vmem:[#allocation2 + $0x8] sm:$0xff]
        %2154 = vmatprep.subr.mxu0 0.0
        %2155 = vmatpush1.msra.mxu0 %v2120
        %2156 = vmatprep.subr.mxu0 0.0
        %2157 = vmatpush1.msra.mxu0 %v2121
        %2158 = vmatprep.subr.mxu0 0.0
        %2159 = vmatpush1.msra.mxu0 %v2122
        %2160 = vmatprep.subr.mxu0 0.0
        %2161 = vmatpush1.msra.mxu0 %v2123
        %2162 = vmatprep.subr.mxu0 0.0
        %2163 = vmatpush1.msra.mxu0 %v2124
        %2164 = vmatprep.subr.mxu0 0.0
        %2165 = vmatpush1.msra.mxu0 %v2125
        %2166 = vmatprep.subr.mxu0 0.0
        %2167 = vmatpush1.msra.mxu0 %v2126
        %2168 = vmatprep.subr.mxu0 0.0
        %2169 = vmatpush1.msra.mxu0 %v2127
        %2170 = vmatprep.subr.mxu0 0.0
        %2171 = vmatpush1.msra.mxu0 %v2128
        %2172 = vmatprep.subr.mxu0 0.0
        %2173 = vmatpush1.msra.mxu0 %v2129
        %2174 = vmatprep.subr.mxu0 0.0
        %2175 = vmatpush1.msra.mxu0 %v2130
        %2176 = vmatprep.subr.mxu0 0.0
        %2177 = vmatpush1.msra.mxu0 %v2131
        %2178 = vmatprep.subr.mxu0 0.0
        %2179 = vmatpush1.msra.mxu0 %v2132
        %2180 = vmatprep.subr.mxu0 0.0
        %2181 = vmatpush1.msra.mxu0 %v2133
        %2182 = vmatprep.subr.mxu0 0.0
        %2183 = vmatpush1.msra.mxu0 %v2134
        %2184 = vmatprep.subr.mxu0 0.0
        %2185 = vmatpush1.msra.mxu0 %v2135
        %2186 = vmatprep.subr.mxu0 0.0
        %2187 = vmatpush1.msra.mxu0 %v2136
        %2188 = vmatprep.subr.mxu0 0.0
        %2189 = vmatpush1.msra.mxu0 %v2137
        %2190 = vmatprep.subr.mxu0 0.0
        %2191 = vmatpush1.msra.mxu0 %v2138
        %2192 = vmatprep.subr.mxu0 0.0
        %2193 = vmatpush1.msra.mxu0 %v2139
        %2194 = vmatprep.subr.mxu0 0.0
        %2195 = vmatpush1.msra.mxu0 %v2140
        %2196 = vmatprep.subr.mxu0 0.0
        %2197 = vmatpush1.msra.mxu0 %v2141
        %2198 = vmatprep.subr.mxu0 0.0
        %2199 = vmatpush1.msra.mxu0 %v2142
        %2200 = vmatprep.subr.mxu0 0.0
        %2201 = vmatpush1.msra.mxu0 %v2143
        %2202 = vmatprep.subr.mxu0 0.0
        %2203 = vmatpush1.msra.mxu0 %v2144
        %2204 = vmatprep.subr.mxu0 0.0
        %2205 = vmatpush1.msra.mxu0 %v2145
        %2206 = vmatprep.subr.mxu0 0.0
        %2207 = vmatpush1.msra.mxu0 %v2146
        %2208 = vmatprep.subr.mxu0 0.0
        %2209 = vmatpush1.msra.mxu0 %v2147
        %2210 = vmatprep.subr.mxu0 0.0
        %2211 = vmatpush1.msra.mxu0 %v2148
        %2212 = vmatprep.subr.mxu0 0.0
        %2213 = vmatpush1.msra.mxu0 %v2149
        %2214 = vmatprep.subr.mxu0 0.0
        %2215 = vmatpush1.msra.mxu0 %v2150
        %2216 = vmatprep.subr.mxu0 0.0
        %2217 = vmatpush1.msra.mxu0 %v2151
        %2218 = vmatprep.mubr.f32.mxu0 %v2153
        %2219 = vmatmul.mubr.f32.gmra.mrb[0].mxu0 %v2152
        %v2220 = vpop.f32.mrb[0].mxu0
        %v2221 = vadd.f32 0.0, %v2220
        %v2222 = vpop.f32.mrb[0].mxu0
        %2223 = vdwg.mxu0
        %s2224 = smul.u32 %s35, 128
        %v2225 = vlaneseq
        %v2226 = vand.u32 %v2225, 127
        %v2227 = vstv %s2224
        %v2228 = vadd.s32 %v2227, %v2226
        %v2229 = vld [vmem:[%s678] sm:$0xff]
        %2230 = vset.pattern.permute.xlu0 0
        %2231 = vperm.xlu0 %2230, %v2229
        %v2232 = vpop.permute.xlu0 %2231
        %vm2233 = vcmp.ge.s32.totalorder %v2228, %v2232
        %v2234 = vsel %vm2233, 0.0, %v2221
        %2235 = vst [vmem:[%s674] sm:$0xff] %v2234
        %s2236 = sand.u32 %s300, 1
        %s2237 = scalar_lea.sflag [#allocation5], %s2236
        %s2238 = sand.u32 %s300, 1
        %s2239 = smul.addr %s2238, 8
        %s2240 = scalar_lea.vmem [#allocation13], %s2239
        // Predicated region
        $region130: #{tpu_custom_call.1} parent=100 // pred_check
          %p2241 = pneg %p310
        $region131: #{tpu_custom_call.1} parent=100 // pred_check_branch
          %2243 = sbr.rel (%p2241) target = $region133
        $region132: #{tpu_custom_call.1} parent=100 // pred_region
          %s2245 = ssub.s32 128, 128
          %2246 = vsyncadd %s2237, %s2245
          %s2247 = smul.addr %s34, 2
          %s2248 = sadd.s32 %s35, %s2247
          %s2249 = smul.addr %s2248, 128
          %s2250 = scalar_lea.hbm %s11, %s2249
          %s2252 = sshll.u32 %s2240, 4
          %s2253 = int_to_ptr.vmem [resolvable:$true] %s2252
          %2255 = dma.vmem_to_hbm [thread:$0]  %s2253, 128, %s2250, %s2237
        $region133: #{tpu_custom_call.1} parent=100 // pred_fallthru
          _
      $region101: #{tpu_custom_call.1} parent=5 // pred_fallthru
        _
      %p2256 = scmp.le.s32.totalorder 2, %s25
      // Predicated region
      $region134: #{tpu_custom_call.1} parent=5 // pred_check
        %p2257 = pneg %p2256
      $region135: #{tpu_custom_call.1} parent=5 // pred_check_branch
        %2259 = sbr.rel (%p2257) target = $region137
      $region136: #{tpu_custom_call.1} parent=5 // pred_region
        %s2260 = ssub.s32 %s25, 2
        // Predicated region
        $region138: #{tpu_custom_call.1} parent=136 // pred_check
          %p2261 = pneg %p316
        $region139: #{tpu_custom_call.1} parent=136 // pred_check_branch
          %2263 = sbr.rel (%p2261) target = $region141
        $region140: #{tpu_custom_call.1} parent=136 // pred_region
          %s2264 = sand.u32 %s301, 1
          %s2265 = scalar_lea.sflag [#allocation5], %s2264
          %s2266 = sand.u32 %s301, 1
          %s2267 = smul.addr %s2266, 8
          %s2268 = scalar_lea.vmem [#allocation13], %s2267
          %2269 = dma.done %s2265, 128
        $region141: #{tpu_custom_call.1} parent=136 // pred_fallthru
          _
      $region137: #{tpu_custom_call.1} parent=5 // pred_fallthru
        _
    $region6: #{tpu_custom_call.1} parent=1 // loop_footer
      %s29 = sadd.s32 1, %s25
    $region7: #{tpu_custom_call.1} parent=1 // loop_footer_branch
      %24 = sbr.rel target = $region3
    $region8: #{tpu_custom_call.1} parent=1 // loop_exit
      _
    %2270 = vsyncpa [#allocation4], 1
    %s2271 = scalar_lea.sflag [#allocation4], 1
    %2272 = vsyncpa %s2271, 1
    %2273 = vsyncpa [#allocation8], 1
    %2274 = vsyncpa [#allocation11], 1
    %2275 = vsyncpa [#allocation5], 1
    %s2276 = scalar_lea.sflag [#allocation5], 1
    %2277 = vsyncpa %s2276, 1

</llo_original>
